<compile_context>
chip_gen: v7x
topology: tpu7x:2x2x1
jax: 0.10.0
libtpu: 0.0.40
codegen_flags: <defaults>
</compile_context>

<pallas_src>
import functools

import jax
import jax.numpy as jnp
from jax import lax
from jax.experimental import pallas as pl
from jax.experimental.pallas import tpu as pltpu


def _round_up(x, m):
    return (x + m - 1) // m * m


def _attention_kernel(x_ref, wqkv_ref, bqkv_ref, wproj_ref, bproj_ref,
                      o_ref, q_scr, k_scr, v_scr, ctx_scr,
                      *, n_heads, head_dim, n_tokens, tq):
    # x_ref:     (1, pn, D)  bf16  all (padded) tokens of the current sample
    # wqkv_ref:  (3, D, D)   bf16  [Wq^T * scale, Wk^T, Wv^T]  (in, out) layout
    # bqkv_ref:  (3, 1, D)   f32   [bq * scale, bk, bv]
    # wproj_ref: (D, D)      bf16  Wproj^T (in, out)
    # bproj_ref: (1, D)      f32
    # o_ref:     (1, tq, D)        output tile
    # scratch: q (tq,D) bf16, k (pn,D) bf16, v (pn,D) bf16, ctx (tq,D) bf16
    pn = k_scr.shape[0]
    qi = pl.program_id(1)

    # K/V projections once per sample.  The qi grid axis is "arbitrary"
    # (sequential), scratch persists across grid steps, and qi restarts at 0 for
    # every new sample, so this guard is per-sample correct.
    @pl.when(qi == 0)
    def _():
        x_all = x_ref[0]                                          # (pn, D) bf16
        k_scr[...] = (jnp.dot(x_all, wqkv_ref[1],
                              preferred_element_type=jnp.float32)
                      + bqkv_ref[1]).astype(k_scr.dtype)
        v_scr[...] = (jnp.dot(x_all, wqkv_ref[2],
                              preferred_element_type=jnp.float32)
                      + bqkv_ref[2]).astype(v_scr.dtype)

    # Q projection for this query tile (softmax scale already folded into Wq/bq).
    q_start = pl.multiple_of(qi * tq, tq)
    x_q = x_ref[0, pl.ds(q_start, tq), :]                         # (tq, D) bf16
    q_scr[...] = (jnp.dot(x_q, wqkv_ref[0],
                          preferred_element_type=jnp.float32)
                  + bqkv_ref[0]).astype(q_scr.dtype)

    # Key-padding mask (static specialization: only emitted when padding exists).
    if pn > n_tokens:
        key_ids = lax.broadcasted_iota(jnp.int32, (tq, pn), 1)
        key_valid = key_ids < n_tokens                            # (tq, pn) bool
    else:
        key_valid = None

    bf16 = jnp.bfloat16
    for h in range(n_heads):                    # static offsets, head-concat drain
        lo, hi = h * head_dim, (h + 1) * head_dim
        q_h = q_scr[:, lo:hi]                                     # (tq, hd) bf16
        k_h = k_scr[:, lo:hi]                                     # (pn, hd) bf16
        v_h = v_scr[:, lo:hi]                                     # (pn, hd) bf16

        # scores = (q_h * scale) @ k_h^T without a transpose: contract last dims.
        s = lax.dot_general(q_h, k_h,
                            dimension_numbers=(((1,), (1,)), ((), ())),
                            preferred_element_type=jnp.float32)   # (tq, pn) f32
        if key_valid is not None:
            s = jnp.where(key_valid, s, jnp.float32(-1e30))       # mask in f32

        s = s - jnp.max(s, axis=-1, keepdims=True)
        p = jnp.exp(s)
        p = p * pl.reciprocal(jnp.sum(p, axis=-1, keepdims=True), approx=True)

        pv = jnp.dot(p.astype(bf16), v_h,
                     preferred_element_type=jnp.float32)          # (tq, hd)
        ctx_scr[:, lo:hi] = pv.astype(ctx_scr.dtype)              # head-concat

    # Single full-depth (K = D) output projection + bias.
    o_ref[0] = (jnp.dot(ctx_scr[...], wproj_ref[...],
                        preferred_element_type=jnp.float32)
                + bproj_ref[...]).astype(o_ref.dtype)


def attention_forward(x, wqkv, bqkv, wproj, bproj, *, n_heads, q_block=None):
    """x: (B, N, D); wqkv: (3D, D) torch layout; bqkv: (3D,); wproj: (D, D); bproj: (D,)."""
    B, N, D = x.shape
    assert D % n_heads == 0
    head_dim = D // n_heads
    scale = head_dim ** (-0.5)

    # Query-token tiling along the second grid axis.
    if q_block is None:
        tq = 128 if N >= 128 else _round_up(N, 8)
    else:
        tq = _round_up(min(q_block, _round_up(N, 8)), 8)
    pn = _round_up(N, tq)          # padded token count (multiple of tq, hence of 8)
    nq = pn // tq

    # Pad tokens (padded KEYS are masked in-kernel; padded query rows sliced off).
    x_p = x if pn == N else jnp.pad(x, ((0, 0), (0, pn - N), (0, 0)))
    x_bf = x_p.astype(jnp.bfloat16)                     # bf16 MXU inputs, f32 acc

    # Weight prep (glue, outside the kernel): (in, out) layout, bf16; biases f32.
    # Softmax scale is folded into Wq / bq so the kernel never multiplies scores.
    scale_vec = jnp.array([scale, 1.0, 1.0], dtype=jnp.float32).reshape(3, 1, 1)
    wqkv_io = jnp.asarray(wqkv, jnp.float32).reshape(3, D, D).transpose(0, 2, 1)
    wqkv_r = (wqkv_io * scale_vec).astype(jnp.bfloat16)
    bqkv_r = (jnp.asarray(bqkv, jnp.float32).reshape(3, 1, D) * scale_vec
              ).astype(jnp.float32)
    wproj_t = jnp.asarray(wproj, jnp.float32).T.astype(jnp.bfloat16)
    bproj_2d = jnp.asarray(bproj, jnp.float32).reshape(1, D)

    kernel = functools.partial(_attention_kernel, n_heads=n_heads,
                               head_dim=head_dim, n_tokens=N, tq=tq)

    out_p = pl.pallas_call(
        kernel,
        out_shape=jax.ShapeDtypeStruct((B, pn, D), x.dtype),
        grid_spec=pltpu.PrefetchScalarGridSpec(
            num_scalar_prefetch=0,
            grid=(B, nq),
            in_specs=[
                pl.BlockSpec((1, pn, D), lambda b, qi: (b, 0, 0)),    # x (all tokens)
                pl.BlockSpec((3, D, D), lambda b, qi: (0, 0, 0)),     # Wq*s/Wk/Wv bf16
                pl.BlockSpec((3, 1, D), lambda b, qi: (0, 0, 0)),     # bq*s/bk/bv
                pl.BlockSpec((D, D), lambda b, qi: (0, 0)),           # Wproj^T bf16
                pl.BlockSpec((1, D), lambda b, qi: (0, 0)),           # bproj
            ],
            out_specs=pl.BlockSpec((1, tq, D), lambda b, qi: (b, qi, 0)),
            scratch_shapes=[
                pltpu.VMEM((tq, D), jnp.bfloat16),   # q (current query tile)
                pltpu.VMEM((pn, D), jnp.bfloat16),   # k (whole sample, reused)
                pltpu.VMEM((pn, D), jnp.bfloat16),   # v (whole sample, reused)
                pltpu.VMEM((tq, D), jnp.bfloat16),   # head-concat context
            ]),
        compiler_params=pltpu.CompilerParams(
            # qi must be sequential so the qi==0 K/V projection guard is valid.
            dimension_semantics=("parallel", "arbitrary"),
            vmem_limit_bytes=32 * 1024 * 1024),
    )(x_bf, wqkv_r, bqkv_r, wproj_t, bproj_2d)

    return out_p if pn == N else out_p[:, :N, :]


def _reference(x, wqkv, bqkv, wproj, bproj, n_heads):
    """Pure-JAX mirror of the PyTorch Attention.forward (f32)."""
    B, N, D = x.shape
    hd = D // n_heads
    scale = hd ** (-0.5)
    qkv = x @ wqkv.T + bqkv                                  # (B, N, 3D)
    qkv = qkv.reshape(B, N, 3, n_heads, hd).transpose(2, 0, 3, 1, 4)
    q, k, v = qkv[0], qkv[1], qkv[2]                         # (B, H, N, hd)
    dp = jnp.einsum("bhqd,bhkd->bhqk", q, k) * scale
    attn = jax.nn.softmax(dp, axis=-1)
    wa = jnp.einsum("bhqk,bhkd->bhqd", attn, v)              # (B, H, N, hd)
    wa = wa.transpose(0, 2, 1, 3).reshape(B, N, D)
    return wa @ wproj.T + bproj


if __name__ == "__main__":
    def run_case(B, N, D, n_heads, case_idx, q_block=None):
        key = jax.random.fold_in(jax.random.PRNGKey(0), case_idx)
        kx, kw1, kb1, kw2, kb2 = jax.random.split(key, 5)
        x = jax.random.normal(kx, (B, N, D), dtype=jnp.float32)
        # torch nn.Linear layouts: weight (out, in), bias (out,)
        wqkv = jax.random.normal(kw1, (3 * D, D), dtype=jnp.float32) * 0.05
        bqkv = jax.random.normal(kb1, (3 * D,), dtype=jnp.float32) * 0.05
        wproj = jax.random.normal(kw2, (D, D), dtype=jnp.float32) * 0.05
        bproj = jax.random.normal(kb2, (D,), dtype=jnp.float32) * 0.05

        out = attention_forward(x, wqkv, bqkv, wproj, bproj,
                                n_heads=n_heads, q_block=q_block)
        out = jax.block_until_ready(out)

        ref = _reference(x, wqkv, bqkv, wproj, bproj, n_heads)
        assert out.shape == (B, N, D), out.shape
        err = float(jnp.max(jnp.abs(out - ref)))
        # bf16 MXU inputs -> relaxed tolerance vs the f32 reference.
        assert err < 2e-2, f"case {case_idx}: max abs err {err}"

    # Primary small config (B, N, D, H) consistent with the module.
    run_case(2, 8, 32, 4, 0)
    # Exercise padded tokens + multiple query tiles per sample (K/V reuse across
    # qi via the pl.when guard) + key-mask path.
    run_case(2, 10, 32, 4, 1, q_block=8)

    print("KERNEL_OK")
</pallas_src>

<mosaic_0001>
module attributes {stable_mosaic.version = 11 : i64} {
  func.func @_attention_kernel(%arg0: i32, %arg1: i32, %arg2: memref<1x8x32xbf16, #tpu.memory_space<vmem>>, %arg3: memref<3x32x32xbf16, #tpu.memory_space<vmem>>, %arg4: memref<3x1x32xf32, #tpu.memory_space<vmem>>, %arg5: memref<32x32xbf16, #tpu.memory_space<vmem>>, %arg6: memref<1x32xf32, #tpu.memory_space<vmem>>, %arg7: memref<1x8x32xf32, #tpu.memory_space<vmem>>, %arg8: memref<8x32xbf16, #tpu.memory_space<vmem>>, %arg9: memref<8x32xbf16, #tpu.memory_space<vmem>>, %arg10: memref<8x32xbf16, #tpu.memory_space<vmem>>, %arg11: memref<8x32xbf16, #tpu.memory_space<vmem>>) attributes {dimension_semantics = [#tpu.dimension_semantics<parallel>, #tpu.dimension_semantics<arbitrary>], iteration_bounds = array<i64: 2, 1>, scalar_prefetch = 0 : i64, scratch_operands = 4 : i64, tpu.core_type = #tpu.core_type<tc>, window_params = [{transform_indices = @transform_0, window_bounds = array<i64: 1, 8, 32>}, {pipeline_mode = #tpu.pipeline_mode<synchronous>, transform_indices = @transform_1, window_bounds = array<i64: 3, 32, 32>}, {pipeline_mode = #tpu.pipeline_mode<synchronous>, transform_indices = @transform_2, window_bounds = array<i64: 3, 1, 32>}, {pipeline_mode = #tpu.pipeline_mode<synchronous>, transform_indices = @transform_3, window_bounds = array<i64: 32, 32>}, {pipeline_mode = #tpu.pipeline_mode<synchronous>, transform_indices = @transform_4, window_bounds = array<i64: 1, 32>}, {transform_indices = @transform_5, window_bounds = array<i64: 1, 8, 32>}]} {
    %c0_i32 = arith.constant 0 : i32
    %0 = arith.cmpi eq, %arg1, %c0_i32 : i32
    %1 = arith.extui %0 : i1 to i32
    %c0_i32_0 = arith.constant 0 : i32
    %2 = arith.cmpi ne, %1, %c0_i32_0 : i32
    scf.if %2 {
      %c0_65 = arith.constant 0 : index
      %c0_66 = arith.constant 0 : index
      %c0_67 = arith.constant 0 : index
      %98 = vector.load %arg2[%c0_65, %c0_66, %c0_67] : memref<1x8x32xbf16, #tpu.memory_space<vmem>>, vector<1x8x32xbf16>
      %99 = vector.shape_cast %98 : vector<1x8x32xbf16> to vector<8x32xbf16>
      %c1 = arith.constant 1 : index
      %c0_68 = arith.constant 0 : index
      %c0_69 = arith.constant 0 : index
      %100 = vector.load %arg3[%c1, %c0_68, %c0_69] : memref<3x32x32xbf16, #tpu.memory_space<vmem>>, vector<1x32x32xbf16>
      %101 = vector.shape_cast %100 : vector<1x32x32xbf16> to vector<32x32xbf16>
      %cst_70 = arith.constant dense<0.000000e+00> : vector<8x32xf32>
      %102 = tpu.matmul %99, %101, %cst_70 {dimension_numbers = #tpu.dot_dimension_numbers<[1], [0], [0], [1], [0, 0, 1, 1], [], []>} : vector<8x32xbf16>, vector<32x32xbf16>, vector<8x32xf32> -> vector<8x32xf32>
      %c1_71 = arith.constant 1 : index
      %c0_72 = arith.constant 0 : index
      %c0_73 = arith.constant 0 : index
      %103 = vector.load %arg4[%c1_71, %c0_72, %c0_73] : memref<3x1x32xf32, #tpu.memory_space<vmem>>, vector<1x1x32xf32>
      %104 = vector.shape_cast %103 : vector<1x1x32xf32> to vector<1x32xf32>
      %105 = vector.broadcast %104 : vector<1x32xf32> to vector<8x32xf32>
      %106 = arith.addf %102, %105 : vector<8x32xf32>
      %107 = arith.truncf %106 : vector<8x32xf32> to vector<8x32xbf16>
      %c0_74 = arith.constant 0 : index
      %c0_75 = arith.constant 0 : index
      %108 = vector.load %arg9[%c0_74, %c0_75] : memref<8x32xbf16, #tpu.memory_space<vmem>>, vector<8x32xbf16>
      tpu.vector_store %arg9[%c0_74, %c0_75], %107 {strides = array<i32>} : memref<8x32xbf16, #tpu.memory_space<vmem>>, vector<8x32xbf16>,
      %c2 = arith.constant 2 : index
      %c0_76 = arith.constant 0 : index
      %c0_77 = arith.constant 0 : index
      %109 = vector.load %arg3[%c2, %c0_76, %c0_77] : memref<3x32x32xbf16, #tpu.memory_space<vmem>>, vector<1x32x32xbf16>
      %110 = vector.shape_cast %109 : vector<1x32x32xbf16> to vector<32x32xbf16>
      %cst_78 = arith.constant dense<0.000000e+00> : vector<8x32xf32>
      %111 = tpu.matmul %99, %110, %cst_78 {dimension_numbers = #tpu.dot_dimension_numbers<[1], [0], [0], [1], [0, 0, 1, 1], [], []>} : vector<8x32xbf16>, vector<32x32xbf16>, vector<8x32xf32> -> vector<8x32xf32>
      %c2_79 = arith.constant 2 : index
      %c0_80 = arith.constant 0 : index
      %c0_81 = arith.constant 0 : index
      %112 = vector.load %arg4[%c2_79, %c0_80, %c0_81] : memref<3x1x32xf32, #tpu.memory_space<vmem>>, vector<1x1x32xf32>
      %113 = vector.shape_cast %112 : vector<1x1x32xf32> to vector<1x32xf32>
      %114 = vector.broadcast %113 : vector<1x32xf32> to vector<8x32xf32>
      %115 = arith.addf %111, %114 : vector<8x32xf32>
      %116 = arith.truncf %115 : vector<8x32xf32> to vector<8x32xbf16>
      %c0_82 = arith.constant 0 : index
      %c0_83 = arith.constant 0 : index
      %117 = vector.load %arg10[%c0_82, %c0_83] : memref<8x32xbf16, #tpu.memory_space<vmem>>, vector<8x32xbf16>
      tpu.vector_store %arg10[%c0_82, %c0_83], %116 {strides = array<i32>} : memref<8x32xbf16, #tpu.memory_space<vmem>>, vector<8x32xbf16>,
    } else {
    }
    %c8_i32 = arith.constant 8 : i32
    %3 = arith.muli %arg1, %c8_i32 : i32
    %4 = tpu.assume_multiple %3, 8 : i32
    %c0 = arith.constant 0 : index
    %5 = arith.index_cast %4 : i32 to index
    %c0_1 = arith.constant 0 : index
    %6 = vector.load %arg2[%c0, %5, %c0_1] : memref<1x8x32xbf16, #tpu.memory_space<vmem>>, vector<1x8x32xbf16>
    %7 = vector.shape_cast %6 : vector<1x8x32xbf16> to vector<8x32xbf16>
    %c0_2 = arith.constant 0 : index
    %c0_3 = arith.constant 0 : index
    %c0_4 = arith.constant 0 : index
    %8 = vector.load %arg3[%c0_2, %c0_3, %c0_4] : memref<3x32x32xbf16, #tpu.memory_space<vmem>>, vector<1x32x32xbf16>
    %9 = vector.shape_cast %8 : vector<1x32x32xbf16> to vector<32x32xbf16>
    %cst = arith.constant dense<0.000000e+00> : vector<8x32xf32>
    %10 = tpu.matmul %7, %9, %cst {dimension_numbers = #tpu.dot_dimension_numbers<[1], [0], [0], [1], [0, 0, 1, 1], [], []>} : vector<8x32xbf16>, vector<32x32xbf16>, vector<8x32xf32> -> vector<8x32xf32>
    %c0_5 = arith.constant 0 : index
    %c0_6 = arith.constant 0 : index
    %c0_7 = arith.constant 0 : index
    %11 = vector.load %arg4[%c0_5, %c0_6, %c0_7] : memref<3x1x32xf32, #tpu.memory_space<vmem>>, vector<1x1x32xf32>
    %12 = vector.shape_cast %11 : vector<1x1x32xf32> to vector<1x32xf32>
    %13 = vector.broadcast %12 : vector<1x32xf32> to vector<8x32xf32>
    %14 = arith.addf %10, %13 : vector<8x32xf32>
    %15 = arith.truncf %14 : vector<8x32xf32> to vector<8x32xbf16>
    %c0_8 = arith.constant 0 : index
    %c0_9 = arith.constant 0 : index
    %16 = vector.load %arg8[%c0_8, %c0_9] : memref<8x32xbf16, #tpu.memory_space<vmem>>, vector<8x32xbf16>
    tpu.vector_store %arg8[%c0_8, %c0_9], %15 {strides = array<i32>} : memref<8x32xbf16, #tpu.memory_space<vmem>>, vector<8x32xbf16>,
    %c0_10 = arith.constant 0 : index
    %c0_11 = arith.constant 0 : index
    %17 = vector.load %arg8[%c0_10, %c0_11] : memref<8x32xbf16, #tpu.memory_space<vmem>>, vector<8x8xbf16>
    %c0_12 = arith.constant 0 : index
    %c0_13 = arith.constant 0 : index
    %18 = vector.load %arg9[%c0_12, %c0_13] : memref<8x32xbf16, #tpu.memory_space<vmem>>, vector<8x8xbf16>
    %c0_14 = arith.constant 0 : index
    %c0_15 = arith.constant 0 : index
    %19 = vector.load %arg10[%c0_14, %c0_15] : memref<8x32xbf16, #tpu.memory_space<vmem>>, vector<8x8xbf16>
    %cst_16 = arith.constant dense<0.000000e+00> : vector<8x8xf32>
    %20 = tpu.matmul %17, %18, %cst_16 {dimension_numbers = #tpu.dot_dimension_numbers<[1], [1], [0], [0], [0, 0, 1, 0], [], []>} : vector<8x8xbf16>, vector<8x8xbf16>, vector<8x8xf32> -> vector<8x8xf32>
    %cst_17 = arith.constant dense<0xFF800000> : vector<8xf32>
    %21 = vector.multi_reduction <maximumf>, %20, %cst_17 [1] : vector<8x8xf32> to vector<8xf32>
    %22 = vector.shape_cast %21 : vector<8xf32> to vector<8x1xf32>
    %23 = vector.broadcast %22 : vector<8x1xf32> to vector<8x8xf32>
    %24 = arith.subf %20, %23 : vector<8x8xf32>
    %25 = math.exp %24 : vector<8x8xf32>
    %cst_18 = arith.constant dense<0.000000e+00> : vector<8xf32>
    %26 = vector.multi_reduction <add>, %25, %cst_18 [1] : vector<8x8xf32> to vector<8xf32>
    %27 = vector.shape_cast %26 : vector<8xf32> to vector<8x1xf32>
    %28 = tpu.reciprocal %27 {approx = true} : vector<8x1xf32> -> vector<8x1xf32>
    %29 = vector.broadcast %28 : vector<8x1xf32> to vector<8x8xf32>
    %30 = arith.mulf %25, %29 : vector<8x8xf32>
    %31 = arith.truncf %30 : vector<8x8xf32> to vector<8x8xbf16>
    %cst_19 = arith.constant dense<0.000000e+00> : vector<8x8xf32>
    %32 = tpu.matmul %31, %19, %cst_19 {dimension_numbers = #tpu.dot_dimension_numbers<[1], [0], [0], [1], [0, 0, 1, 1], [], []>} : vector<8x8xbf16>, vector<8x8xbf16>, vector<8x8xf32> -> vector<8x8xf32>
    %33 = arith.truncf %32 : vector<8x8xf32> to vector<8x8xbf16>
    %c0_20 = arith.constant 0 : index
    %c0_21 = arith.constant 0 : index
    %34 = vector.load %arg11[%c0_20, %c0_21] : memref<8x32xbf16, #tpu.memory_space<vmem>>, vector<8x8xbf16>
    tpu.vector_store %arg11[%c0_20, %c0_21], %33 {strides = array<i32>} : memref<8x32xbf16, #tpu.memory_space<vmem>>, vector<8x8xbf16>,
    %c0_22 = arith.constant 0 : index
    %c8 = arith.constant 8 : index
    %35 = vector.load %arg8[%c0_22, %c8] : memref<8x32xbf16, #tpu.memory_space<vmem>>, vector<8x8xbf16>
    %c0_23 = arith.constant 0 : index
    %c8_24 = arith.constant 8 : index
    %36 = vector.load %arg9[%c0_23, %c8_24] : memref<8x32xbf16, #tpu.memory_space<vmem>>, vector<8x8xbf16>
    %c0_25 = arith.constant 0 : index
    %c8_26 = arith.constant 8 : index
    %37 = vector.load %arg10[%c0_25, %c8_26] : memref<8x32xbf16, #tpu.memory_space<vmem>>, vector<8x8xbf16>
    %cst_27 = arith.constant dense<0.000000e+00> : vector<8x8xf32>
    %38 = tpu.matmul %35, %36, %cst_27 {dimension_numbers = #tpu.dot_dimension_numbers<[1], [1], [0], [0], [0, 0, 1, 0], [], []>} : vector<8x8xbf16>, vector<8x8xbf16>, vector<8x8xf32> -> vector<8x8xf32>
    %cst_28 = arith.constant dense<0xFF800000> : vector<8xf32>
    %39 = vector.multi_reduction <maximumf>, %38, %cst_28 [1] : vector<8x8xf32> to vector<8xf32>
    %40 = vector.shape_cast %39 : vector<8xf32> to vector<8x1xf32>
    %41 = vector.broadcast %40 : vector<8x1xf32> to vector<8x8xf32>
    %42 = arith.subf %38, %41 : vector<8x8xf32>
    %43 = math.exp %42 : vector<8x8xf32>
    %cst_29 = arith.constant dense<0.000000e+00> : vector<8xf32>
    %44 = vector.multi_reduction <add>, %43, %cst_29 [1] : vector<8x8xf32> to vector<8xf32>
    %45 = vector.shape_cast %44 : vector<8xf32> to vector<8x1xf32>
    %46 = tpu.reciprocal %45 {approx = true} : vector<8x1xf32> -> vector<8x1xf32>
    %47 = vector.broadcast %46 : vector<8x1xf32> to vector<8x8xf32>
    %48 = arith.mulf %43, %47 : vector<8x8xf32>
    %49 = arith.truncf %48 : vector<8x8xf32> to vector<8x8xbf16>
    %cst_30 = arith.constant dense<0.000000e+00> : vector<8x8xf32>
    %50 = tpu.matmul %49, %37, %cst_30 {dimension_numbers = #tpu.dot_dimension_numbers<[1], [0], [0], [1], [0, 0, 1, 1], [], []>} : vector<8x8xbf16>, vector<8x8xbf16>, vector<8x8xf32> -> vector<8x8xf32>
    %51 = arith.truncf %50 : vector<8x8xf32> to vector<8x8xbf16>
    %c0_31 = arith.constant 0 : index
    %c8_32 = arith.constant 8 : index
    %52 = vector.load %arg11[%c0_31, %c8_32] : memref<8x32xbf16, #tpu.memory_space<vmem>>, vector<8x8xbf16>
    tpu.vector_store %arg11[%c0_31, %c8_32], %51 {strides = array<i32>} : memref<8x32xbf16, #tpu.memory_space<vmem>>, vector<8x8xbf16>,
    %c0_33 = arith.constant 0 : index
    %c16 = arith.constant 16 : index
    %53 = vector.load %arg8[%c0_33, %c16] : memref<8x32xbf16, #tpu.memory_space<vmem>>, vector<8x8xbf16>
    %c0_34 = arith.constant 0 : index
    %c16_35 = arith.constant 16 : index
    %54 = vector.load %arg9[%c0_34, %c16_35] : memref<8x32xbf16, #tpu.memory_space<vmem>>, vector<8x8xbf16>
    %c0_36 = arith.constant 0 : index
    %c16_37 = arith.constant 16 : index
    %55 = vector.load %arg10[%c0_36, %c16_37] : memref<8x32xbf16, #tpu.memory_space<vmem>>, vector<8x8xbf16>
    %cst_38 = arith.constant dense<0.000000e+00> : vector<8x8xf32>
    %56 = tpu.matmul %53, %54, %cst_38 {dimension_numbers = #tpu.dot_dimension_numbers<[1], [1], [0], [0], [0, 0, 1, 0], [], []>} : vector<8x8xbf16>, vector<8x8xbf16>, vector<8x8xf32> -> vector<8x8xf32>
    %cst_39 = arith.constant dense<0xFF800000> : vector<8xf32>
    %57 = vector.multi_reduction <maximumf>, %56, %cst_39 [1] : vector<8x8xf32> to vector<8xf32>
    %58 = vector.shape_cast %57 : vector<8xf32> to vector<8x1xf32>
    %59 = vector.broadcast %58 : vector<8x1xf32> to vector<8x8xf32>
    %60 = arith.subf %56, %59 : vector<8x8xf32>
    %61 = math.exp %60 : vector<8x8xf32>
    %cst_40 = arith.constant dense<0.000000e+00> : vector<8xf32>
    %62 = vector.multi_reduction <add>, %61, %cst_40 [1] : vector<8x8xf32> to vector<8xf32>
    %63 = vector.shape_cast %62 : vector<8xf32> to vector<8x1xf32>
    %64 = tpu.reciprocal %63 {approx = true} : vector<8x1xf32> -> vector<8x1xf32>
    %65 = vector.broadcast %64 : vector<8x1xf32> to vector<8x8xf32>
    %66 = arith.mulf %61, %65 : vector<8x8xf32>
    %67 = arith.truncf %66 : vector<8x8xf32> to vector<8x8xbf16>
    %cst_41 = arith.constant dense<0.000000e+00> : vector<8x8xf32>
    %68 = tpu.matmul %67, %55, %cst_41 {dimension_numbers = #tpu.dot_dimension_numbers<[1], [0], [0], [1], [0, 0, 1, 1], [], []>} : vector<8x8xbf16>, vector<8x8xbf16>, vector<8x8xf32> -> vector<8x8xf32>
    %69 = arith.truncf %68 : vector<8x8xf32> to vector<8x8xbf16>
    %c0_42 = arith.constant 0 : index
    %c16_43 = arith.constant 16 : index
    %70 = vector.load %arg11[%c0_42, %c16_43] : memref<8x32xbf16, #tpu.memory_space<vmem>>, vector<8x8xbf16>
    tpu.vector_store %arg11[%c0_42, %c16_43], %69 {strides = array<i32>} : memref<8x32xbf16, #tpu.memory_space<vmem>>, vector<8x8xbf16>,
    %c0_44 = arith.constant 0 : index
    %c24 = arith.constant 24 : index
    %71 = vector.load %arg8[%c0_44, %c24] : memref<8x32xbf16, #tpu.memory_space<vmem>>, vector<8x8xbf16>
    %c0_45 = arith.constant 0 : index
    %c24_46 = arith.constant 24 : index
    %72 = vector.load %arg9[%c0_45, %c24_46] : memref<8x32xbf16, #tpu.memory_space<vmem>>, vector<8x8xbf16>
    %c0_47 = arith.constant 0 : index
    %c24_48 = arith.constant 24 : index
    %73 = vector.load %arg10[%c0_47, %c24_48] : memref<8x32xbf16, #tpu.memory_space<vmem>>, vector<8x8xbf16>
    %cst_49 = arith.constant dense<0.000000e+00> : vector<8x8xf32>
    %74 = tpu.matmul %71, %72, %cst_49 {dimension_numbers = #tpu.dot_dimension_numbers<[1], [1], [0], [0], [0, 0, 1, 0], [], []>} : vector<8x8xbf16>, vector<8x8xbf16>, vector<8x8xf32> -> vector<8x8xf32>
    %cst_50 = arith.constant dense<0xFF800000> : vector<8xf32>
    %75 = vector.multi_reduction <maximumf>, %74, %cst_50 [1] : vector<8x8xf32> to vector<8xf32>
    %76 = vector.shape_cast %75 : vector<8xf32> to vector<8x1xf32>
    %77 = vector.broadcast %76 : vector<8x1xf32> to vector<8x8xf32>
    %78 = arith.subf %74, %77 : vector<8x8xf32>
    %79 = math.exp %78 : vector<8x8xf32>
    %cst_51 = arith.constant dense<0.000000e+00> : vector<8xf32>
    %80 = vector.multi_reduction <add>, %79, %cst_51 [1] : vector<8x8xf32> to vector<8xf32>
    %81 = vector.shape_cast %80 : vector<8xf32> to vector<8x1xf32>
    %82 = tpu.reciprocal %81 {approx = true} : vector<8x1xf32> -> vector<8x1xf32>
    %83 = vector.broadcast %82 : vector<8x1xf32> to vector<8x8xf32>
    %84 = arith.mulf %79, %83 : vector<8x8xf32>
    %85 = arith.truncf %84 : vector<8x8xf32> to vector<8x8xbf16>
    %cst_52 = arith.constant dense<0.000000e+00> : vector<8x8xf32>
    %86 = tpu.matmul %85, %73, %cst_52 {dimension_numbers = #tpu.dot_dimension_numbers<[1], [0], [0], [1], [0, 0, 1, 1], [], []>} : vector<8x8xbf16>, vector<8x8xbf16>, vector<8x8xf32> -> vector<8x8xf32>
    %87 = arith.truncf %86 : vector<8x8xf32> to vector<8x8xbf16>
    %c0_53 = arith.constant 0 : index
    %c24_54 = arith.constant 24 : index
    %88 = vector.load %arg11[%c0_53, %c24_54] : memref<8x32xbf16, #tpu.memory_space<vmem>>, vector<8x8xbf16>
    tpu.vector_store %arg11[%c0_53, %c24_54], %87 {strides = array<i32>} : memref<8x32xbf16, #tpu.memory_space<vmem>>, vector<8x8xbf16>,
    %c0_55 = arith.constant 0 : index
    %c0_56 = arith.constant 0 : index
    %89 = vector.load %arg11[%c0_55, %c0_56] : memref<8x32xbf16, #tpu.memory_space<vmem>>, vector<8x32xbf16>
    %c0_57 = arith.constant 0 : index
    %c0_58 = arith.constant 0 : index
    %90 = vector.load %arg5[%c0_57, %c0_58] : memref<32x32xbf16, #tpu.memory_space<vmem>>, vector<32x32xbf16>
    %cst_59 = arith.constant dense<0.000000e+00> : vector<8x32xf32>
    %91 = tpu.matmul %89, %90, %cst_59 {dimension_numbers = #tpu.dot_dimension_numbers<[1], [0], [0], [1], [0, 0, 1, 1], [], []>} : vector<8x32xbf16>, vector<32x32xbf16>, vector<8x32xf32> -> vector<8x32xf32>
    %c0_60 = arith.constant 0 : index
    %c0_61 = arith.constant 0 : index
    %92 = vector.load %arg6[%c0_60, %c0_61] : memref<1x32xf32, #tpu.memory_space<vmem>>, vector<1x32xf32>
    %93 = vector.broadcast %92 : vector<1x32xf32> to vector<8x32xf32>
    %94 = arith.addf %91, %93 : vector<8x32xf32>
    %c0_62 = arith.constant 0 : index
    %c0_63 = arith.constant 0 : index
    %c0_64 = arith.constant 0 : index
    %95 = vector.load %arg7[%c0_62, %c0_63, %c0_64] : memref<1x8x32xf32, #tpu.memory_space<vmem>>, vector<1x8x32xf32>
    %96 = vector.shape_cast %95 : vector<1x8x32xf32> to vector<8x32xf32>
    %97 = vector.shape_cast %94 : vector<8x32xf32> to vector<1x8x32xf32>
    tpu.vector_store %arg7[%c0_62, %c0_63, %c0_64], %97 {strides = array<i32>} : memref<1x8x32xf32, #tpu.memory_space<vmem>>, vector<1x8x32xf32>,
    return
  }
  func.func @transform_0(%arg0: i32, %arg1: i32) -> (i32, i32, i32) {
    %c0_i32 = arith.constant 0 : i32
    %c0_i32_0 = arith.constant 0 : i32
    %c0_i32_1 = arith.constant 0 : i32
    return %arg0, %c0_i32, %c0_i32_0 : i32, i32, i32
  }
  func.func @transform_1(%arg0: i32, %arg1: i32) -> (i32, i32, i32) {
    %c0_i32 = arith.constant 0 : i32
    %c0_i32_0 = arith.constant 0 : i32
    %c0_i32_1 = arith.constant 0 : i32
    %c0_i32_2 = arith.constant 0 : i32
    return %c0_i32, %c0_i32_0, %c0_i32_1 : i32, i32, i32
  }
  func.func @transform_2(%arg0: i32, %arg1: i32) -> (i32, i32, i32) {
    %c0_i32 = arith.constant 0 : i32
    %c0_i32_0 = arith.constant 0 : i32
    %c0_i32_1 = arith.constant 0 : i32
    %c0_i32_2 = arith.constant 0 : i32
    return %c0_i32, %c0_i32_0, %c0_i32_1 : i32, i32, i32
  }
  func.func @transform_3(%arg0: i32, %arg1: i32) -> (i32, i32) {
    %c0_i32 = arith.constant 0 : i32
    %c0_i32_0 = arith.constant 0 : i32
    %c0_i32_1 = arith.constant 0 : i32
    return %c0_i32, %c0_i32_0 : i32, i32
  }
  func.func @transform_4(%arg0: i32, %arg1: i32) -> (i32, i32) {
    %c0_i32 = arith.constant 0 : i32
    %c0_i32_0 = arith.constant 0 : i32
    %c0_i32_1 = arith.constant 0 : i32
    return %c0_i32, %c0_i32_0 : i32, i32
  }
  func.func @transform_5(%arg0: i32, %arg1: i32) -> (i32, i32, i32) {
    %c0_i32 = arith.constant 0 : i32
    %c0_i32_0 = arith.constant 0 : i32
    return %arg0, %arg1, %c0_i32 : i32, i32, i32
  }
}

</mosaic_0001>

<llo_original>
// kernel: tpu_custom_call.1
$region0: #{tpu_custom_call.1}
  #allocation0 [shape = 'u32[]', space=smem, size = 0x4, offset = 0x4, fixed_abs, tag = 'smem constant byte address 0x4 - core index']
  #allocation1 [shape = 'u32[144,128]{1,0:T(1,128)}', space=vmem, size = 0x12000, scoped, tag = 'internal scratch']
  #allocation2 [shape = 'bf16[8,32]{1,0:T(8,128)(2,1)}', space=vmem, size = 0x800, scoped, tag = 'scratch operand']
  #allocation3 [shape = 'bf16[8,32]{1,0:T(8,128)(2,1)}', space=vmem, size = 0x800, scoped, tag = 'scratch operand']
  #allocation4 [shape = 'bf16[8,32]{1,0:T(8,128)(2,1)}', space=vmem, size = 0x800, scoped, tag = 'scratch operand']
  #allocation5 [shape = 'bf16[8,32]{1,0:T(8,128)(2,1)}', space=vmem, size = 0x800, scoped, tag = 'scratch operand']
  %s0 = inlined_call_operand.hbm [shape: bf16[2,8,32], index: 0, kind: input, shape index: {}]
  %s1 = inlined_call_operand.hbm [shape: bf16[3,32,32], index: 1, kind: input, shape index: {}]
  %s2 = inlined_call_operand.vmem [shape: f32[3,1,32], index: 2, kind: input, shape index: {}]
  %s3 = inlined_call_operand.hbm [shape: bf16[32,32], index: 3, kind: input, shape index: {}]
  %s4 = inlined_call_operand.vmem [shape: f32[1,32], index: 4, kind: input, shape index: {}]
  %s5 = inlined_call_operand.hbm [shape: f32[2,8,32], index: 5, kind: output, shape index: {}]
  %s6 = sld [smem:[#allocation0]]
  $region69: #{tpu_custom_call.1} parent=0
    _
  %s8 = ssub.s32 1, %s6
  %s9 = scalar_select 0, %s8, %s6
  $region1: #{tpu_custom_call.1} parent=0
    #allocation6 [shape = 'u8[4096]{0}', space=vmem, size = 0x1000, scoped, tag = 'input window, operand 0']
    #allocation7 [shape = 's32[2]{0}', space=sflag, size = 0x8, scoped, tag = 'scoped memory for tpu_custom_call.1']
    #allocation8 [shape = 's32[2]{0}', space=sflag, size = 0x8, scoped, tag = 'scoped memory for tpu_custom_call.1']
    #allocation9 [shape = 'u8[24576]{0}', space=vmem, size = 0x6000, scoped, tag = 'input window, operand 1, single buffered']
    #allocation10 [shape = 's32[1]{0}', space=sflag, size = 0x4, scoped, tag = 'scoped memory for tpu_custom_call.1']
    #allocation11 [shape = 'u8[8192]{0}', space=vmem, size = 0x2000, scoped, tag = 'input window, operand 3, single buffered']
    #allocation12 [shape = 'u8[8192]{0}', space=vmem, size = 0x2000, scoped, tag = 'output window, operand 0']
    %10 = vsyncpa [#allocation7], 0
    %s11 = scalar_lea.sflag [#allocation7], 1
    %12 = vsyncpa %s11, 0
    %13 = vsyncpa [#allocation10], 0
    %14 = vsyncpa [#allocation8], 0
    %s15 = scalar_lea.sflag [#allocation8], 1
    %16 = vsyncpa %s15, 0
    loop: start=0, step=1, limit=4
    $region2: #{tpu_custom_call.1} parent=1 // loop_pre_header
      _
    $region3: #{tpu_custom_call.1} parent=1 // loop_header
      %s18 = sphi 0, %s22
      %p19 = scmp.ge.s32.totalorder %s18, 4
      %s25 = sphi 0, %s37
      %s26 = sphi 0, %s33
      %s27 = sphi 0, %s25
      %s28 = sphi 0, %s26
      %s29 = sphi 0, %s27
      %s30 = sphi 0, %s28
      %s40 = sphi 0, %s42
      %s43 = sphi 0, %s40
      %s44 = sphi 0, %s43
      %s60 = sphi 0, %s44
      %s64 = sphi 0, %s64
      %s66 = sphi 0, %s64
      %s67 = sphi 0, %s66
      %s81 = sphi 0, %s67
      %s85 = sphi 0, %s85
      %s87 = sphi 0, %s85
      %s88 = sphi 0, %s87
      %s102 = sphi 0, %s88
      %s106 = sphi 0, %s106
      %s108 = sphi 0, %s106
      %s109 = sphi 0, %s108
      %s123 = sphi 0, %s109
      %s127 = sphi 0, %s127
      %s129 = sphi 0, %s127
      %s130 = sphi 0, %s129
      %s144 = sphi 0, %s130
      %s152 = sphi 0, %s154
      %s155 = sphi 0, %s152
      %s156 = sphi 0, %s155
      %s172 = sphi 0, %s156
    $region4: #{tpu_custom_call.1} parent=1 // loop_header_branch
      %21 = sbr.rel (%p19) target = $region8
    $region5: #{tpu_custom_call.1} parent=1 // loop_body
      %s23 = ssub.s32 %s18, 1
      %s24 = ssub.s32 %s18, 2
      %s31 = sadd.s32 1, %s26
      %p32 = scmp.ge.s32.totalorder %s31, 1
      %s33 = scalar_select %p32, 0, %s31
      %s34 = sadd.s32 1, %s25
      %s35 = scalar_select %p32, %s34, %s25
      %p36 = scmp.ge.s32.totalorder %s35, 2
      %s37 = scalar_select %p36, 0, %s35
      %s38 = ssub.s32 %s25, %s37
      %p39 = scmp.eq.s32.totalorder %s38, 0
      %s41 = sadd.s32 %s40, 1
      %s42 = scalar_select %p39, %s40, %s41
      %p45 = pneg %p39
      %p46 = scmp.eq.s32.totalorder %s18, 1
      %p47 = por %p45, %p46
      %p48 = scmp.ne.s32.totalorder %s40, %s43
      %p49 = scmp.eq.s32.totalorder %s18, 0
      %p50 = por %p48, %p49
      %p51 = scmp.ne.s32.totalorder %s40, %s43
      %p52 = scmp.eq.s32.totalorder %s23, 1
      %p53 = por %p51, %p52
      %p54 = scmp.ne.s32.totalorder %s43, %s44
      %p55 = scmp.eq.s32.totalorder %s23, 0
      %p56 = por %p54, %p55
      %p57 = scmp.ne.s32.totalorder %s43, %s44
      %p58 = scmp.eq.s32.totalorder %s24, 1
      %p59 = por %p57, %p58
      %p61 = scmp.ne.s32.totalorder %s44, %s60
      %p62 = scmp.eq.s32.totalorder %s24, 0
      %p63 = por %p61, %p62
      %s65 = sadd.s32 %s64, 1
      %p68 = scmp.eq.s32.totalorder %s18, 1
      %p69 = scmp.ne.s32.totalorder %s64, %s66
      %p70 = scmp.eq.s32.totalorder %s18, 0
      %p71 = por %p69, %p70
      %p72 = scmp.ne.s32.totalorder %s64, %s66
      %p73 = scmp.eq.s32.totalorder %s23, 1
      %p74 = por %p72, %p73
      %p75 = scmp.ne.s32.totalorder %s66, %s67
      %p76 = scmp.eq.s32.totalorder %s23, 0
      %p77 = por %p75, %p76
      %p78 = scmp.ne.s32.totalorder %s66, %s67
      %p79 = scmp.eq.s32.totalorder %s24, 1
      %p80 = por %p78, %p79
      %p82 = scmp.ne.s32.totalorder %s67, %s81
      %p83 = scmp.eq.s32.totalorder %s24, 0
      %p84 = por %p82, %p83
      %s86 = sadd.s32 %s85, 1
      %p89 = scmp.eq.s32.totalorder %s18, 1
      %p90 = scmp.ne.s32.totalorder %s85, %s87
      %p91 = scmp.eq.s32.totalorder %s18, 0
      %p92 = por %p90, %p91
      %p93 = scmp.ne.s32.totalorder %s85, %s87
      %p94 = scmp.eq.s32.totalorder %s23, 1
      %p95 = por %p93, %p94
      %p96 = scmp.ne.s32.totalorder %s87, %s88
      %p97 = scmp.eq.s32.totalorder %s23, 0
      %p98 = por %p96, %p97
      %p99 = scmp.ne.s32.totalorder %s87, %s88
      %p100 = scmp.eq.s32.totalorder %s24, 1
      %p101 = por %p99, %p100
      %p103 = scmp.ne.s32.totalorder %s88, %s102
      %p104 = scmp.eq.s32.totalorder %s24, 0
      %p105 = por %p103, %p104
      %s107 = sadd.s32 %s106, 1
      %p110 = scmp.eq.s32.totalorder %s18, 1
      %p111 = scmp.ne.s32.totalorder %s106, %s108
      %p112 = scmp.eq.s32.totalorder %s18, 0
      %p113 = por %p111, %p112
      %p114 = scmp.ne.s32.totalorder %s106, %s108
      %p115 = scmp.eq.s32.totalorder %s23, 1
      %p116 = por %p114, %p115
      %p117 = scmp.ne.s32.totalorder %s108, %s109
      %p118 = scmp.eq.s32.totalorder %s23, 0
      %p119 = por %p117, %p118
      %p120 = scmp.ne.s32.totalorder %s108, %s109
      %p121 = scmp.eq.s32.totalorder %s24, 1
      %p122 = por %p120, %p121
      %p124 = scmp.ne.s32.totalorder %s109, %s123
      %p125 = scmp.eq.s32.totalorder %s24, 0
      %p126 = por %p124, %p125
      %s128 = sadd.s32 %s127, 1
      %p131 = scmp.eq.s32.totalorder %s18, 1
      %p132 = scmp.ne.s32.totalorder %s127, %s129
      %p133 = scmp.eq.s32.totalorder %s18, 0
      %p134 = por %p132, %p133
      %p135 = scmp.ne.s32.totalorder %s127, %s129
      %p136 = scmp.eq.s32.totalorder %s23, 1
      %p137 = por %p135, %p136
      %p138 = scmp.ne.s32.totalorder %s129, %s130
      %p139 = scmp.eq.s32.totalorder %s23, 0
      %p140 = por %p138, %p139
      %p141 = scmp.ne.s32.totalorder %s129, %s130
      %p142 = scmp.eq.s32.totalorder %s24, 1
      %p143 = por %p141, %p142
      %p145 = scmp.ne.s32.totalorder %s130, %s144
      %p146 = scmp.eq.s32.totalorder %s24, 0
      %p147 = por %p145, %p146
      %s148 = ssub.s32 %s25, %s37
      %s149 = ssub.s32 %s26, %s33
      %s150 = sor.u32 %s148, %s149
      %p151 = scmp.eq.s32.totalorder %s150, 0
      %s153 = sadd.s32 %s152, 1
      %s154 = scalar_select %p151, %s152, %s153
      %p157 = pneg %p151
      %p158 = scmp.eq.s32.totalorder %s18, 1
      %p159 = por %p157, %p158
      %p160 = scmp.ne.s32.totalorder %s152, %s155
      %p161 = scmp.eq.s32.totalorder %s18, 0
      %p162 = por %p160, %p161
      %p163 = scmp.ne.s32.totalorder %s152, %s155
      %p164 = scmp.eq.s32.totalorder %s23, 1
      %p165 = por %p163, %p164
      %p166 = scmp.ne.s32.totalorder %s155, %s156
      %p167 = scmp.eq.s32.totalorder %s23, 0
      %p168 = por %p166, %p167
      %p169 = scmp.ne.s32.totalorder %s155, %s156
      %p170 = scmp.eq.s32.totalorder %s24, 1
      %p171 = por %p169, %p170
      %p173 = scmp.ne.s32.totalorder %s156, %s172
      %p174 = scmp.eq.s32.totalorder %s24, 0
      %p175 = por %p173, %p174
      %p176 = scmp.le.s32.totalorder 1, %s18
      %p177 = scmp.lt.s32.totalorder %s18, 3
      %p178 = pnand %p176, %p177
      %p179 = pneg %p178
      // Predicated region
      $region9: #{tpu_custom_call.1} parent=5 // pred_check
        _
      $region10: #{tpu_custom_call.1} parent=5 // pred_check_branch
        %181 = sbr.rel (%p178) target = $region12
      $region11: #{tpu_custom_call.1} parent=5 // pred_region
        %s182 = ssub.s32 %s18, 1
        // Predicated region
        $region13: #{tpu_custom_call.1} parent=11 // pred_check
          %p183 = pneg %p77
        $region14: #{tpu_custom_call.1} parent=11 // pred_check_branch
          %185 = sbr.rel (%p183) target = $region16
        $region15: #{tpu_custom_call.1} parent=11 // pred_region
          %s187 = ssub.s32 768, 768
          %188 = vsyncadd [#allocation10], %s187
          %s189 = sshll.u32 [#allocation9], 4
          %s190 = int_to_ptr.vmem [resolvable:$true] %s189
          %195 = dma.hbm_to_vmem [thread:$0]  %s1, 768, %s190, [#allocation10], 64, 64, 4
        $region16: #{tpu_custom_call.1} parent=11 // pred_fallthru
          _
        // Predicated region
        $region17: #{tpu_custom_call.1} parent=11 // pred_check
          %p196 = pneg %p98
        $region18: #{tpu_custom_call.1} parent=11 // pred_check_branch
          %198 = sbr.rel (%p196) target = $region20
        $region19: #{tpu_custom_call.1} parent=11 // pred_region
          _
        $region20: #{tpu_custom_call.1} parent=11 // pred_fallthru
          _
        // Predicated region
        $region21: #{tpu_custom_call.1} parent=11 // pred_check
          %p199 = pneg %p119
        $region22: #{tpu_custom_call.1} parent=11 // pred_check_branch
          %201 = sbr.rel (%p199) target = $region24
        $region23: #{tpu_custom_call.1} parent=11 // pred_region
          %s203 = ssub.s32 256, 256
          %204 = vsyncadd [#allocation10], %s203
          %s205 = sshll.u32 [#allocation11], 4
          %s206 = int_to_ptr.vmem [resolvable:$true] %s205
          %211 = dma.hbm_to_vmem [thread:$0]  %s3, 256, %s206, [#allocation10], 64, 64, 4
        $region24: #{tpu_custom_call.1} parent=11 // pred_fallthru
          _
        // Predicated region
        $region25: #{tpu_custom_call.1} parent=11 // pred_check
          %p212 = pneg %p140
        $region26: #{tpu_custom_call.1} parent=11 // pred_check_branch
          %214 = sbr.rel (%p212) target = $region28
        $region27: #{tpu_custom_call.1} parent=11 // pred_region
          _
        $region28: #{tpu_custom_call.1} parent=11 // pred_fallthru
          _
      $region12: #{tpu_custom_call.1} parent=5 // pred_fallthru
        _
      %p215 = scmp.lt.s32.totalorder %s18, 2
      // Predicated region
      $region29: #{tpu_custom_call.1} parent=5 // pred_check
        %p216 = pneg %p215
      $region30: #{tpu_custom_call.1} parent=5 // pred_check_branch
        %218 = sbr.rel (%p216) target = $region32
      $region31: #{tpu_custom_call.1} parent=5 // pred_region
        // Predicated region
        $region33: #{tpu_custom_call.1} parent=31 // pred_check
          %p219 = pneg %p50
        $region34: #{tpu_custom_call.1} parent=31 // pred_check_branch
          %221 = sbr.rel (%p219) target = $region36
        $region35: #{tpu_custom_call.1} parent=31 // pred_region
          %s222 = sand.u32 %s40, 1
          %s223 = scalar_lea.sflag [#allocation7], %s222
          %s224 = sand.u32 %s40, 1
          %s225 = smul.addr %s224, 4
          %s226 = scalar_lea.vmem [#allocation6], %s225
          %s228 = ssub.s32 64, 64
          %229 = vsyncadd %s223, %s228
          %s230 = smul.addr %s25, 64
          %s231 = scalar_lea.hbm %s0, %s230
          %s233 = sshll.u32 %s226, 4
          %s234 = int_to_ptr.vmem [resolvable:$true] %s233
          %236 = dma.hbm_to_vmem [thread:$0]  %s231, 64, %s234, %s223
        $region36: #{tpu_custom_call.1} parent=31 // pred_fallthru
          _
      $region32: #{tpu_custom_call.1} parent=5 // pred_fallthru
        _
      %p237 = scmp.le.s32.totalorder 1, %s18
      %p238 = scmp.lt.s32.totalorder %s18, 3
      %p239 = pnand %p237, %p238
      %p240 = pneg %p239
      // Predicated region
      $region37: #{tpu_custom_call.1} parent=5 // pred_check
        _
      $region38: #{tpu_custom_call.1} parent=5 // pred_check_branch
        %242 = sbr.rel (%p239) target = $region40
      $region39: #{tpu_custom_call.1} parent=5 // pred_region
        %s243 = ssub.s32 %s18, 1
        %s244 = sand.u32 %s43, 1
        %s245 = scalar_lea.sflag [#allocation7], %s244
        %s246 = sand.u32 %s43, 1
        %s247 = smul.addr %s246, 4
        %s248 = scalar_lea.vmem [#allocation6], %s247
        // Predicated region
        $region41: #{tpu_custom_call.1} parent=39 // pred_check
          %p249 = pneg %p56
        $region42: #{tpu_custom_call.1} parent=39 // pred_check_branch
          %251 = sbr.rel (%p249) target = $region44
        $region43: #{tpu_custom_call.1} parent=39 // pred_region
          %252 = dma.done %s245, 64
        $region44: #{tpu_custom_call.1} parent=39 // pred_fallthru
          _
        // Predicated region
        $region45: #{tpu_custom_call.1} parent=39 // pred_check
          %p253 = pneg %p77
        $region46: #{tpu_custom_call.1} parent=39 // pred_check_branch
          %255 = sbr.rel (%p253) target = $region48
        $region47: #{tpu_custom_call.1} parent=39 // pred_region
          %256 = dma.done [#allocation10], 768
        $region48: #{tpu_custom_call.1} parent=39 // pred_fallthru
          _
        // Predicated region
        $region49: #{tpu_custom_call.1} parent=39 // pred_check
          %p257 = pneg %p119
        $region50: #{tpu_custom_call.1} parent=39 // pred_check_branch
          %259 = sbr.rel (%p257) target = $region52
        $region51: #{tpu_custom_call.1} parent=39 // pred_region
          %260 = dma.done [#allocation10], 256
        $region52: #{tpu_custom_call.1} parent=39 // pred_fallthru
          _
        %s261 = sand.u32 %s43, 1
        %s262 = scalar_lea.sflag [#allocation7], %s261
        %s263 = sand.u32 %s43, 1
        %s264 = smul.addr %s263, 4
        %s265 = scalar_lea.vmem [#allocation6], %s264
        %p266 = pneg %p56
        %p267 = pneg %p53
        %p268 = pneg %p77
        %p269 = pneg %p74
        %p270 = pneg %p98
        %p271 = pneg %p95
        %p272 = pneg %p119
        %p273 = pneg %p116
        %p274 = pneg %p140
        %p275 = pneg %p137
        %p276 = pneg %p168
        %p277 = pneg %p165
        %s278 = sand.u32 %s155, 1
        %s279 = scalar_lea.sflag [#allocation8], %s278
        %s280 = sand.u32 %s155, 1
        %s281 = smul.addr %s280, 8
        %s282 = scalar_lea.vmem [#allocation12], %s281
        %p284 = scmp.eq.s32.totalorder %s28, 0
        // Predicated region
        $region53: #{tpu_custom_call.1} parent=39 // pred_check
          %p285 = pneg %p284
        $region54: #{tpu_custom_call.1} parent=39 // pred_check_branch
          %287 = sbr.rel (%p285) target = $region56
        $region55: #{tpu_custom_call.1} parent=39 // pred_region
          %v288 = vld [vmem:[%s248] sm:$0xf]
          %s289 = scalar_lea.vmem [#allocation9], 16
          %v290 = vld [vmem:[%s289] sm:$0xf]
          %v291 = vld [vmem:[%s289 + $0x4] sm:$0xf]
          %v292 = vld [vmem:[%s289 + $0x8] sm:$0xf]
          %v293 = vld [vmem:[%s289 + $0xc] sm:$0xf]
          %s294 = scalar_lea.vmem %s2, 1
          %v295 = vld [vmem:[%s294] sm:$0x1]
          %v297 = vlaneseq
          %v298 = vshrl.u32 %v297, 7
          %v299 = vsub.s32 0, %v298
          %v300 = vrot.slane %v295, %v299
          %v306 = vunpack.c.l.b16 %v290
          %v307 = vunpack.c.l.b16 %v291
          %v308 = vunpack.c.l.b16 %v292
          %v309 = vunpack.c.l.b16 %v293
          %v310 = vpack.c.b16 %v307, %v306
          %v311 = vpack.c.b16 %v309, %v308
          %vm314 = vcmask 261120
          %v316 = vsel %vm314, %v288, 0
          %318 = vmatprep.subr.bf16.mxu0 0
          %319 = vmatpush1.bf16.msra.mxu0 %v310
          %320 = vmatprep.subr.bf16.mxu0 0
          %321 = vmatpush1.bf16.msra.mxu0 %v311
          %322 = vmatprep.subr.bf16.mxu0 0
          %323 = vmatpush1.bf16.msra.mxu0 0
          %324 = vmatprep.subr.bf16.mxu0 0
          %325 = vmatpush1.bf16.msra.mxu0 0
          %326 = vmatprep.subr.bf16.mxu0 0
          %327 = vmatpush1.bf16.msra.mxu0 0
          %328 = vmatprep.subr.bf16.mxu0 0
          %329 = vmatpush1.bf16.msra.mxu0 0
          %330 = vmatprep.subr.bf16.mxu0 0
          %331 = vmatpush1.bf16.msra.mxu0 0
          %332 = vmatprep.subr.bf16.mxu0 0
          %333 = vmatpush1.bf16.msra.mxu0 0
          %334 = vmatprep.subr.bf16.mxu0 0
          %335 = vmatpush1.bf16.msra.mxu0 0
          %336 = vmatprep.subr.bf16.mxu0 0
          %337 = vmatpush1.bf16.msra.mxu0 0
          %338 = vmatprep.subr.bf16.mxu0 0
          %339 = vmatpush1.bf16.msra.mxu0 0
          %340 = vmatprep.subr.bf16.mxu0 0
          %341 = vmatpush1.bf16.msra.mxu0 0
          %342 = vmatprep.subr.bf16.mxu0 0
          %343 = vmatpush1.bf16.msra.mxu0 0
          %344 = vmatprep.subr.bf16.mxu0 0
          %345 = vmatpush1.bf16.msra.mxu0 0
          %346 = vmatprep.subr.bf16.mxu0 0
          %347 = vmatpush1.bf16.msra.mxu0 0
          %348 = vmatprep.subr.bf16.mxu0 0
          %349 = vmatpush1.bf16.msra.mxu0 0
          %350 = vmatprep.mubr.bf16.mxu0 0
          %351 = vmatmul.mubr.bf16.gmra.mrb[0].mxu0 %v316
          %v352 = vpop.f32.mrb[0].mxu0
          %v353 = vadd.f32 %v300, %v352
          %v354 = vpop.f32.mrb[0].mxu0
          %v355 = vpop.f32.mrb[0].mxu0
          %v356 = vpop.f32.mrb[0].mxu0
          %357 = vdwg.mxu0
          %v358 = vpack.c.bf16 %v353, %v353
          %vm359 = vcmask 257024
          %360 = vst.msk [vmem:[#allocation3] sm:$0xf] %vm359, %v358
          %s361 = scalar_lea.vmem [#allocation9], 32
          %v362 = vld [vmem:[%s361] sm:$0xf]
          %v363 = vld [vmem:[%s361 + $0x4] sm:$0xf]
          %v364 = vld [vmem:[%s361 + $0x8] sm:$0xf]
          %v365 = vld [vmem:[%s361 + $0xc] sm:$0xf]
          %s366 = scalar_lea.vmem %s2, 2
          %v367 = vld [vmem:[%s366] sm:$0x1]
          %v369 = vlaneseq
          %v370 = vshrl.u32 %v369, 7
          %v371 = vsub.s32 0, %v370
          %v372 = vrot.slane %v367, %v371
          %v378 = vunpack.c.l.b16 %v362
          %v379 = vunpack.c.l.b16 %v363
          %v380 = vunpack.c.l.b16 %v364
          %v381 = vunpack.c.l.b16 %v365
          %v382 = vpack.c.b16 %v379, %v378
          %v383 = vpack.c.b16 %v381, %v380
          %386 = vmatprep.subr.bf16.mxu0 0
          %387 = vmatpush1.bf16.msra.mxu0 %v382
          %388 = vmatprep.subr.bf16.mxu0 0
          %389 = vmatpush1.bf16.msra.mxu0 %v383
          %390 = vmatprep.subr.bf16.mxu0 0
          %391 = vmatpush1.bf16.msra.mxu0 0
          %392 = vmatprep.subr.bf16.mxu0 0
          %393 = vmatpush1.bf16.msra.mxu0 0
          %394 = vmatprep.subr.bf16.mxu0 0
          %395 = vmatpush1.bf16.msra.mxu0 0
          %396 = vmatprep.subr.bf16.mxu0 0
          %397 = vmatpush1.bf16.msra.mxu0 0
          %398 = vmatprep.subr.bf16.mxu0 0
          %399 = vmatpush1.bf16.msra.mxu0 0
          %400 = vmatprep.subr.bf16.mxu0 0
          %401 = vmatpush1.bf16.msra.mxu0 0
          %402 = vmatprep.subr.bf16.mxu0 0
          %403 = vmatpush1.bf16.msra.mxu0 0
          %404 = vmatprep.subr.bf16.mxu0 0
          %405 = vmatpush1.bf16.msra.mxu0 0
          %406 = vmatprep.subr.bf16.mxu0 0
          %407 = vmatpush1.bf16.msra.mxu0 0
          %408 = vmatprep.subr.bf16.mxu0 0
          %409 = vmatpush1.bf16.msra.mxu0 0
          %410 = vmatprep.subr.bf16.mxu0 0
          %411 = vmatpush1.bf16.msra.mxu0 0
          %412 = vmatprep.subr.bf16.mxu0 0
          %413 = vmatpush1.bf16.msra.mxu0 0
          %414 = vmatprep.subr.bf16.mxu0 0
          %415 = vmatpush1.bf16.msra.mxu0 0
          %416 = vmatprep.subr.bf16.mxu0 0
          %417 = vmatpush1.bf16.msra.mxu0 0
          %418 = vmatprep.mubr.bf16.mxu0 0
          %419 = vmatmul.mubr.bf16.gmra.mrb[0].mxu0 %v316
          %v420 = vpop.f32.mrb[0].mxu0
          %v421 = vadd.f32 %v372, %v420
          %v422 = vpop.f32.mrb[0].mxu0
          %v423 = vpop.f32.mrb[0].mxu0
          %v424 = vpop.f32.mrb[0].mxu0
          %425 = vdwg.mxu0
          %v426 = vpack.c.bf16 %v421, %v421
          %427 = vst.msk [vmem:[#allocation4] sm:$0xf] %vm359, %v426
        $region56: #{tpu_custom_call.1} parent=39 // pred_fallthru
          _
        %s428 = smul.u32 %s28, 8
        %s429 = sshra.s32 %s428, 3
        %s430 = sand.u32 %s428, 7
        %s431 = smul.addr %s429, 4
        %s432 = scalar_lea.vmem %s248, %s431 [#allocation6]
        %v433 = vld [vmem:[%s432] sm:$0xf]
        %v434 = vld [vmem:[#allocation9] sm:$0xf]
        %v435 = vld [vmem:[#allocation9 + $0x4] sm:$0xf]
        %v436 = vld [vmem:[#allocation9 + $0x8] sm:$0xf]
        %v437 = vld [vmem:[#allocation9 + $0xc] sm:$0xf]
        %v438 = vld [vmem:[%s2] sm:$0x1]
        %v440 = vlaneseq
        %v441 = vshrl.u32 %v440, 7
        %v442 = vsub.s32 0, %v441
        %v443 = vrot.slane %v438, %v442
        %v449 = vunpack.c.l.b16 %v434
        %v450 = vunpack.c.l.b16 %v435
        %v451 = vunpack.c.l.b16 %v436
        %v452 = vunpack.c.l.b16 %v437
        %v453 = vpack.c.b16 %v450, %v449
        %v454 = vpack.c.b16 %v452, %v451
        %vm457 = vcmask 261120
        %v459 = vsel %vm457, %v433, 0
        %461 = vmatprep.subr.bf16.mxu0 0
        %462 = vmatpush1.bf16.msra.mxu0 %v453
        %463 = vmatprep.subr.bf16.mxu0 0
        %464 = vmatpush1.bf16.msra.mxu0 %v454
        %465 = vmatprep.subr.bf16.mxu0 0
        %466 = vmatpush1.bf16.msra.mxu0 0
        %467 = vmatprep.subr.bf16.mxu0 0
        %468 = vmatpush1.bf16.msra.mxu0 0
        %469 = vmatprep.subr.bf16.mxu0 0
        %470 = vmatpush1.bf16.msra.mxu0 0
        %471 = vmatprep.subr.bf16.mxu0 0
        %472 = vmatpush1.bf16.msra.mxu0 0
        %473 = vmatprep.subr.bf16.mxu0 0
        %474 = vmatpush1.bf16.msra.mxu0 0
        %475 = vmatprep.subr.bf16.mxu0 0
        %476 = vmatpush1.bf16.msra.mxu0 0
        %477 = vmatprep.subr.bf16.mxu0 0
        %478 = vmatpush1.bf16.msra.mxu0 0
        %479 = vmatprep.subr.bf16.mxu0 0
        %480 = vmatpush1.bf16.msra.mxu0 0
        %481 = vmatprep.subr.bf16.mxu0 0
        %482 = vmatpush1.bf16.msra.mxu0 0
        %483 = vmatprep.subr.bf16.mxu0 0
        %484 = vmatpush1.bf16.msra.mxu0 0
        %485 = vmatprep.subr.bf16.mxu0 0
        %486 = vmatpush1.bf16.msra.mxu0 0
        %487 = vmatprep.subr.bf16.mxu0 0
        %488 = vmatpush1.bf16.msra.mxu0 0
        %489 = vmatprep.subr.bf16.mxu0 0
        %490 = vmatpush1.bf16.msra.mxu0 0
        %491 = vmatprep.subr.bf16.mxu0 0
        %492 = vmatpush1.bf16.msra.mxu0 0
        %493 = vmatprep.mubr.bf16.mxu0 0
        %494 = vmatmul.mubr.bf16.gmra.mrb[0].mxu0 %v459
        %v495 = vpop.f32.mrb[0].mxu0
        %v496 = vadd.f32 %v443, %v495
        %v497 = vpop.f32.mrb[0].mxu0
        %v498 = vpop.f32.mrb[0].mxu0
        %v499 = vpop.f32.mrb[0].mxu0
        %500 = vdwg.mxu0
        %v501 = vpack.c.bf16 %v496, %v496
        %vm502 = vcmask 257024
        %503 = vst.msk [vmem:[#allocation2] sm:$0xf] %vm502, %v501
        %v504 = vld [vmem:[#allocation2] sm:$0xf]
        %v505 = vld [vmem:[#allocation3] sm:$0xf]
        %v506 = vld [vmem:[#allocation4] sm:$0xf]
        %vm507 = vcmask 64512
        %v509 = vsel %vm507, %v504, 0
        %v512 = vsel %vm507, %v505, 0
        %514 = vmatprep.subr.bf16.mxu0 0
        %515 = vmatpush1.bf16.xpose.msra.mxu0 %v512
        %516 = vmatprep.subr.bf16.mxu0 0
        %517 = vmatpush1.bf16.xpose.msra.mxu0 0
        %518 = vmatprep.subr.bf16.mxu0 0
        %519 = vmatpush1.bf16.xpose.msra.mxu0 0
        %520 = vmatprep.subr.bf16.mxu0 0
        %521 = vmatpush1.bf16.xpose.msra.mxu0 0
        %522 = vmatprep.subr.bf16.mxu0 0
        %523 = vmatpush1.bf16.xpose.msra.mxu0 0
        %524 = vmatprep.subr.bf16.mxu0 0
        %525 = vmatpush1.bf16.xpose.msra.mxu0 0
        %526 = vmatprep.subr.bf16.mxu0 0
        %527 = vmatpush1.bf16.xpose.msra.mxu0 0
        %528 = vmatprep.subr.bf16.mxu0 0
        %529 = vmatpush1.bf16.xpose.msra.mxu0 0
        %530 = vmatprep.subr.bf16.mxu0 0
        %531 = vmatpush1.bf16.xpose.msra.mxu0 0
        %532 = vmatprep.subr.bf16.mxu0 0
        %533 = vmatpush1.bf16.xpose.msra.mxu0 0
        %534 = vmatprep.subr.bf16.mxu0 0
        %535 = vmatpush1.bf16.xpose.msra.mxu0 0
        %536 = vmatprep.subr.bf16.mxu0 0
        %537 = vmatpush1.bf16.xpose.msra.mxu0 0
        %538 = vmatprep.subr.bf16.mxu0 0
        %539 = vmatpush1.bf16.xpose.msra.mxu0 0
        %540 = vmatprep.subr.bf16.mxu0 0
        %541 = vmatpush1.bf16.xpose.msra.mxu0 0
        %542 = vmatprep.subr.bf16.mxu0 0
        %543 = vmatpush1.bf16.xpose.msra.mxu0 0
        %544 = vmatprep.subr.bf16.mxu0 0
        %545 = vmatpush1.bf16.xpose.msra.mxu0 0
        %546 = vmatprep.mubr.bf16.mxu0 0
        %547 = vmatmul.mubr.bf16.gmra.mrb[0].mxu0 %v509
        %v548 = vpop.f32.mrb[0].mxu0
        %v549 = vadd.f32 0.0, %v548
        %v550 = vpop.f32.mrb[0].mxu0
        %v551 = vpop.f32.mrb[0].mxu0
        %v552 = vpop.f32.mrb[0].mxu0
        %553 = vdwg.mxu0
        %v554 = vsel %vm507, %v549, -inf
        %555 = vmax.xlane.f32.xlu0 %v554
        %v556 = vpop.xlane.xlu0 %555
        %v557 = vsub.f32 %v549, %v556
        %v558 = vmul.f32 %v557, 1.442695
        %v559 = vpow.pop %v558
        %v560 = vsel %vm507, %v559, 0.0
        %561 = vadd.xlane.f32.xlu0 %v560
        %v562 = vpop.xlane.xlu0 %561
        %v563 = vrcp.pop %v562
        %v564 = vmul.f32 %v559, %v563
        %v565 = vpack.c.bf16 %v564, %v564
        %v567 = vsel %vm507, %v565, 0
        %vm569 = vcmask 1043456
        %v571 = vsel %vm569, %v506, 0
        %573 = vmatprep.subr.bf16.mxu0 0
        %574 = vmatpush1.bf16.msra.mxu0 %v571
        %575 = vmatprep.subr.bf16.mxu0 0
        %576 = vmatpush1.bf16.msra.mxu0 0
        %577 = vmatprep.subr.bf16.mxu0 0
        %578 = vmatpush1.bf16.msra.mxu0 0
        %579 = vmatprep.subr.bf16.mxu0 0
        %580 = vmatpush1.bf16.msra.mxu0 0
        %581 = vmatprep.subr.bf16.mxu0 0
        %582 = vmatpush1.bf16.msra.mxu0 0
        %583 = vmatprep.subr.bf16.mxu0 0
        %584 = vmatpush1.bf16.msra.mxu0 0
        %585 = vmatprep.subr.bf16.mxu0 0
        %586 = vmatpush1.bf16.msra.mxu0 0
        %587 = vmatprep.subr.bf16.mxu0 0
        %588 = vmatpush1.bf16.msra.mxu0 0
        %589 = vmatprep.subr.bf16.mxu0 0
        %590 = vmatpush1.bf16.msra.mxu0 0
        %591 = vmatprep.subr.bf16.mxu0 0
        %592 = vmatpush1.bf16.msra.mxu0 0
        %593 = vmatprep.subr.bf16.mxu0 0
        %594 = vmatpush1.bf16.msra.mxu0 0
        %595 = vmatprep.subr.bf16.mxu0 0
        %596 = vmatpush1.bf16.msra.mxu0 0
        %597 = vmatprep.subr.bf16.mxu0 0
        %598 = vmatpush1.bf16.msra.mxu0 0
        %599 = vmatprep.subr.bf16.mxu0 0
        %600 = vmatpush1.bf16.msra.mxu0 0
        %601 = vmatprep.subr.bf16.mxu0 0
        %602 = vmatpush1.bf16.msra.mxu0 0
        %603 = vmatprep.subr.bf16.mxu0 0
        %604 = vmatpush1.bf16.msra.mxu0 0
        %605 = vmatprep.mubr.bf16.mxu0 0
        %606 = vmatmul.mubr.bf16.gmra.mrb[0].mxu0 %v567
        %v607 = vpop.f32.mrb[0].mxu0
        %v608 = vadd.f32 0.0, %v607
        %v609 = vpop.f32.mrb[0].mxu0
        %v610 = vpop.f32.mrb[0].mxu0
        %v611 = vpop.f32.mrb[0].mxu0
        %612 = vdwg.mxu0
        %v613 = vpack.c.bf16 %v608, %v608
        %vm614 = vcmask 60416
        %615 = vst.msk [vmem:[#allocation5] sm:$0xf] %vm614, %v613
        %v616 = vld [vmem:[#allocation2] sm:$0xf]
        %v617 = vld [vmem:[#allocation3] sm:$0xf]
        %v618 = vld [vmem:[#allocation4] sm:$0xf]
        %v620 = vunpack.c.l.b16 %v616
        %v621 = vpack.c.b16 %v620, %v620
        %622 = vrot.lane.b32.xlu0 %v621, 120
        %v623 = vpop.permute.xlu0 %622
        %v625 = vunpack.c.l.b16 %v617
        %v626 = vpack.c.b16 %v625, %v625
        %627 = vrot.lane.b32.xlu0 %v626, 120
        %v628 = vpop.permute.xlu0 %627
        %v630 = vsel %vm507, %v623, 0
        %v633 = vsel %vm507, %v628, 0
        %635 = vmatprep.subr.bf16.mxu0 0
        %636 = vmatpush1.bf16.xpose.msra.mxu0 %v633
        %637 = vmatprep.subr.bf16.mxu0 0
        %638 = vmatpush1.bf16.xpose.msra.mxu0 0
        %639 = vmatprep.subr.bf16.mxu0 0
        %640 = vmatpush1.bf16.xpose.msra.mxu0 0
        %641 = vmatprep.subr.bf16.mxu0 0
        %642 = vmatpush1.bf16.xpose.msra.mxu0 0
        %643 = vmatprep.subr.bf16.mxu0 0
        %644 = vmatpush1.bf16.xpose.msra.mxu0 0
        %645 = vmatprep.subr.bf16.mxu0 0
        %646 = vmatpush1.bf16.xpose.msra.mxu0 0
        %647 = vmatprep.subr.bf16.mxu0 0
        %648 = vmatpush1.bf16.xpose.msra.mxu0 0
        %649 = vmatprep.subr.bf16.mxu0 0
        %650 = vmatpush1.bf16.xpose.msra.mxu0 0
        %651 = vmatprep.subr.bf16.mxu0 0
        %652 = vmatpush1.bf16.xpose.msra.mxu0 0
        %653 = vmatprep.subr.bf16.mxu0 0
        %654 = vmatpush1.bf16.xpose.msra.mxu0 0
        %655 = vmatprep.subr.bf16.mxu0 0
        %656 = vmatpush1.bf16.xpose.msra.mxu0 0
        %657 = vmatprep.subr.bf16.mxu0 0
        %658 = vmatpush1.bf16.xpose.msra.mxu0 0
        %659 = vmatprep.subr.bf16.mxu0 0
        %660 = vmatpush1.bf16.xpose.msra.mxu0 0
        %661 = vmatprep.subr.bf16.mxu0 0
        %662 = vmatpush1.bf16.xpose.msra.mxu0 0
        %663 = vmatprep.subr.bf16.mxu0 0
        %664 = vmatpush1.bf16.xpose.msra.mxu0 0
        %665 = vmatprep.subr.bf16.mxu0 0
        %666 = vmatpush1.bf16.xpose.msra.mxu0 0
        %667 = vmatprep.mubr.bf16.mxu0 0
        %668 = vmatmul.mubr.bf16.gmra.mrb[0].mxu0 %v630
        %v669 = vpop.f32.mrb[0].mxu0
        %v670 = vadd.f32 0.0, %v669
        %v671 = vpop.f32.mrb[0].mxu0
        %v672 = vpop.f32.mrb[0].mxu0
        %v673 = vpop.f32.mrb[0].mxu0
        %674 = vdwg.mxu0
        %v675 = vsel %vm507, %v670, -inf
        %676 = vmax.xlane.f32.xlu0 %v675
        %v677 = vpop.xlane.xlu0 %676
        %v678 = vsub.f32 %v670, %v677
        %v679 = vmul.f32 %v678, 1.442695
        %v680 = vpow.pop %v679
        %v681 = vsel %vm507, %v680, 0.0
        %682 = vadd.xlane.f32.xlu0 %v681
        %v683 = vpop.xlane.xlu0 %682
        %v684 = vrcp.pop %v683
        %v685 = vmul.f32 %v680, %v684
        %v686 = vpack.c.bf16 %v685, %v685
        %v688 = vunpack.c.l.b16 %v618
        %v689 = vpack.c.b16 %v688, %v688
        %690 = vrot.lane.b32.xlu0 %v689, 120
        %v691 = vpop.permute.xlu0 %690
        %v693 = vsel %vm507, %v686, 0
        %v696 = vsel %vm569, %v691, 0
        %698 = vmatprep.subr.bf16.mxu0 0
        %699 = vmatpush1.bf16.msra.mxu0 %v696
        %700 = vmatprep.subr.bf16.mxu0 0
        %701 = vmatpush1.bf16.msra.mxu0 0
        %702 = vmatprep.subr.bf16.mxu0 0
        %703 = vmatpush1.bf16.msra.mxu0 0
        %704 = vmatprep.subr.bf16.mxu0 0
        %705 = vmatpush1.bf16.msra.mxu0 0
        %706 = vmatprep.subr.bf16.mxu0 0
        %707 = vmatpush1.bf16.msra.mxu0 0
        %708 = vmatprep.subr.bf16.mxu0 0
        %709 = vmatpush1.bf16.msra.mxu0 0
        %710 = vmatprep.subr.bf16.mxu0 0
        %711 = vmatpush1.bf16.msra.mxu0 0
        %712 = vmatprep.subr.bf16.mxu0 0
        %713 = vmatpush1.bf16.msra.mxu0 0
        %714 = vmatprep.subr.bf16.mxu0 0
        %715 = vmatpush1.bf16.msra.mxu0 0
        %716 = vmatprep.subr.bf16.mxu0 0
        %717 = vmatpush1.bf16.msra.mxu0 0
        %718 = vmatprep.subr.bf16.mxu0 0
        %719 = vmatpush1.bf16.msra.mxu0 0
        %720 = vmatprep.subr.bf16.mxu0 0
        %721 = vmatpush1.bf16.msra.mxu0 0
        %722 = vmatprep.subr.bf16.mxu0 0
        %723 = vmatpush1.bf16.msra.mxu0 0
        %724 = vmatprep.subr.bf16.mxu0 0
        %725 = vmatpush1.bf16.msra.mxu0 0
        %726 = vmatprep.subr.bf16.mxu0 0
        %727 = vmatpush1.bf16.msra.mxu0 0
        %728 = vmatprep.subr.bf16.mxu0 0
        %729 = vmatpush1.bf16.msra.mxu0 0
        %730 = vmatprep.mubr.bf16.mxu0 0
        %731 = vmatmul.mubr.bf16.gmra.mrb[0].mxu0 %v693
        %v732 = vpop.f32.mrb[0].mxu0
        %v733 = vadd.f32 0.0, %v732
        %v734 = vpop.f32.mrb[0].mxu0
        %v735 = vpop.f32.mrb[0].mxu0
        %v736 = vpop.f32.mrb[0].mxu0
        %737 = vdwg.mxu0
        %v738 = vpack.c.bf16 %v733, %v733
        %v740 = vunpack.c.l.b16 %v738
        %v741 = vpack.c.b16 %v740, %v740
        %742 = vrot.lane.b32.xlu0 %v741, 8
        %v743 = vpop.permute.xlu0 %742
        %vm745 = vcmask 126016
        %746 = vst.msk [vmem:[#allocation5] sm:$0xf] %vm745, %v743
        %v747 = vld [vmem:[#allocation2] sm:$0xf]
        %v748 = vld [vmem:[#allocation3] sm:$0xf]
        %v749 = vld [vmem:[#allocation4] sm:$0xf]
        %v751 = vunpack.c.l.b16 %v747
        %v752 = vpack.c.b16 %v751, %v751
        %753 = vrot.lane.b32.xlu0 %v752, 112
        %v754 = vpop.permute.xlu0 %753
        %v756 = vunpack.c.l.b16 %v748
        %v757 = vpack.c.b16 %v756, %v756
        %758 = vrot.lane.b32.xlu0 %v757, 112
        %v759 = vpop.permute.xlu0 %758
        %v761 = vsel %vm507, %v754, 0
        %v764 = vsel %vm507, %v759, 0
        %766 = vmatprep.subr.bf16.mxu0 0
        %767 = vmatpush1.bf16.xpose.msra.mxu0 %v764
        %768 = vmatprep.subr.bf16.mxu0 0
        %769 = vmatpush1.bf16.xpose.msra.mxu0 0
        %770 = vmatprep.subr.bf16.mxu0 0
        %771 = vmatpush1.bf16.xpose.msra.mxu0 0
        %772 = vmatprep.subr.bf16.mxu0 0
        %773 = vmatpush1.bf16.xpose.msra.mxu0 0
        %774 = vmatprep.subr.bf16.mxu0 0
        %775 = vmatpush1.bf16.xpose.msra.mxu0 0
        %776 = vmatprep.subr.bf16.mxu0 0
        %777 = vmatpush1.bf16.xpose.msra.mxu0 0
        %778 = vmatprep.subr.bf16.mxu0 0
        %779 = vmatpush1.bf16.xpose.msra.mxu0 0
        %780 = vmatprep.subr.bf16.mxu0 0
        %781 = vmatpush1.bf16.xpose.msra.mxu0 0
        %782 = vmatprep.subr.bf16.mxu0 0
        %783 = vmatpush1.bf16.xpose.msra.mxu0 0
        %784 = vmatprep.subr.bf16.mxu0 0
        %785 = vmatpush1.bf16.xpose.msra.mxu0 0
        %786 = vmatprep.subr.bf16.mxu0 0
        %787 = vmatpush1.bf16.xpose.msra.mxu0 0
        %788 = vmatprep.subr.bf16.mxu0 0
        %789 = vmatpush1.bf16.xpose.msra.mxu0 0
        %790 = vmatprep.subr.bf16.mxu0 0
        %791 = vmatpush1.bf16.xpose.msra.mxu0 0
        %792 = vmatprep.subr.bf16.mxu0 0
        %793 = vmatpush1.bf16.xpose.msra.mxu0 0
        %794 = vmatprep.subr.bf16.mxu0 0
        %795 = vmatpush1.bf16.xpose.msra.mxu0 0
        %796 = vmatprep.subr.bf16.mxu0 0
        %797 = vmatpush1.bf16.xpose.msra.mxu0 0
        %798 = vmatprep.mubr.bf16.mxu0 0
        %799 = vmatmul.mubr.bf16.gmra.mrb[0].mxu0 %v761
        %v800 = vpop.f32.mrb[0].mxu0
        %v801 = vadd.f32 0.0, %v800
        %v802 = vpop.f32.mrb[0].mxu0
        %v803 = vpop.f32.mrb[0].mxu0
        %v804 = vpop.f32.mrb[0].mxu0
        %805 = vdwg.mxu0
        %v806 = vsel %vm507, %v801, -inf
        %807 = vmax.xlane.f32.xlu0 %v806
        %v808 = vpop.xlane.xlu0 %807
        %v809 = vsub.f32 %v801, %v808
        %v810 = vmul.f32 %v809, 1.442695
        %v811 = vpow.pop %v810
        %v812 = vsel %vm507, %v811, 0.0
        %813 = vadd.xlane.f32.xlu0 %v812
        %v814 = vpop.xlane.xlu0 %813
        %v815 = vrcp.pop %v814
        %v816 = vmul.f32 %v811, %v815
        %v817 = vpack.c.bf16 %v816, %v816
        %v819 = vunpack.c.l.b16 %v749
        %v820 = vpack.c.b16 %v819, %v819
        %821 = vrot.lane.b32.xlu0 %v820, 112
        %v822 = vpop.permute.xlu0 %821
        %v824 = vsel %vm507, %v817, 0
        %v827 = vsel %vm569, %v822, 0
        %829 = vmatprep.subr.bf16.mxu0 0
        %830 = vmatpush1.bf16.msra.mxu0 %v827
        %831 = vmatprep.subr.bf16.mxu0 0
        %832 = vmatpush1.bf16.msra.mxu0 0
        %833 = vmatprep.subr.bf16.mxu0 0
        %834 = vmatpush1.bf16.msra.mxu0 0
        %835 = vmatprep.subr.bf16.mxu0 0
        %836 = vmatpush1.bf16.msra.mxu0 0
        %837 = vmatprep.subr.bf16.mxu0 0
        %838 = vmatpush1.bf16.msra.mxu0 0
        %839 = vmatprep.subr.bf16.mxu0 0
        %840 = vmatpush1.bf16.msra.mxu0 0
        %841 = vmatprep.subr.bf16.mxu0 0
        %842 = vmatpush1.bf16.msra.mxu0 0
        %843 = vmatprep.subr.bf16.mxu0 0
        %844 = vmatpush1.bf16.msra.mxu0 0
        %845 = vmatprep.subr.bf16.mxu0 0
        %846 = vmatpush1.bf16.msra.mxu0 0
        %847 = vmatprep.subr.bf16.mxu0 0
        %848 = vmatpush1.bf16.msra.mxu0 0
        %849 = vmatprep.subr.bf16.mxu0 0
        %850 = vmatpush1.bf16.msra.mxu0 0
        %851 = vmatprep.subr.bf16.mxu0 0
        %852 = vmatpush1.bf16.msra.mxu0 0
        %853 = vmatprep.subr.bf16.mxu0 0
        %854 = vmatpush1.bf16.msra.mxu0 0
        %855 = vmatprep.subr.bf16.mxu0 0
        %856 = vmatpush1.bf16.msra.mxu0 0
        %857 = vmatprep.subr.bf16.mxu0 0
        %858 = vmatpush1.bf16.msra.mxu0 0
        %859 = vmatprep.subr.bf16.mxu0 0
        %860 = vmatpush1.bf16.msra.mxu0 0
        %861 = vmatprep.mubr.bf16.mxu0 0
        %862 = vmatmul.mubr.bf16.gmra.mrb[0].mxu0 %v824
        %v863 = vpop.f32.mrb[0].mxu0
        %v864 = vadd.f32 0.0, %v863
        %v865 = vpop.f32.mrb[0].mxu0
        %v866 = vpop.f32.mrb[0].mxu0
        %v867 = vpop.f32.mrb[0].mxu0
        %868 = vdwg.mxu0
        %v869 = vpack.c.bf16 %v864, %v864
        %v871 = vunpack.c.l.b16 %v869
        %v872 = vpack.c.b16 %v871, %v871
        %873 = vrot.lane.b32.xlu0 %v872, 16
        %v874 = vpop.permute.xlu0 %873
        %vm876 = vcmask 191616
        %877 = vst.msk [vmem:[#allocation5] sm:$0xf] %vm876, %v874
        %v878 = vld [vmem:[#allocation2] sm:$0xf]
        %v879 = vld [vmem:[#allocation3] sm:$0xf]
        %v880 = vld [vmem:[#allocation4] sm:$0xf]
        %v882 = vunpack.c.l.b16 %v878
        %v883 = vpack.c.b16 %v882, %v882
        %884 = vrot.lane.b32.xlu0 %v883, 104
        %v885 = vpop.permute.xlu0 %884
        %v887 = vunpack.c.l.b16 %v879
        %v888 = vpack.c.b16 %v887, %v887
        %889 = vrot.lane.b32.xlu0 %v888, 104
        %v890 = vpop.permute.xlu0 %889
        %v892 = vsel %vm507, %v885, 0
        %v895 = vsel %vm507, %v890, 0
        %897 = vmatprep.subr.bf16.mxu0 0
        %898 = vmatpush1.bf16.xpose.msra.mxu0 %v895
        %899 = vmatprep.subr.bf16.mxu0 0
        %900 = vmatpush1.bf16.xpose.msra.mxu0 0
        %901 = vmatprep.subr.bf16.mxu0 0
        %902 = vmatpush1.bf16.xpose.msra.mxu0 0
        %903 = vmatprep.subr.bf16.mxu0 0
        %904 = vmatpush1.bf16.xpose.msra.mxu0 0
        %905 = vmatprep.subr.bf16.mxu0 0
        %906 = vmatpush1.bf16.xpose.msra.mxu0 0
        %907 = vmatprep.subr.bf16.mxu0 0
        %908 = vmatpush1.bf16.xpose.msra.mxu0 0
        %909 = vmatprep.subr.bf16.mxu0 0
        %910 = vmatpush1.bf16.xpose.msra.mxu0 0
        %911 = vmatprep.subr.bf16.mxu0 0
        %912 = vmatpush1.bf16.xpose.msra.mxu0 0
        %913 = vmatprep.subr.bf16.mxu0 0
        %914 = vmatpush1.bf16.xpose.msra.mxu0 0
        %915 = vmatprep.subr.bf16.mxu0 0
        %916 = vmatpush1.bf16.xpose.msra.mxu0 0
        %917 = vmatprep.subr.bf16.mxu0 0
        %918 = vmatpush1.bf16.xpose.msra.mxu0 0
        %919 = vmatprep.subr.bf16.mxu0 0
        %920 = vmatpush1.bf16.xpose.msra.mxu0 0
        %921 = vmatprep.subr.bf16.mxu0 0
        %922 = vmatpush1.bf16.xpose.msra.mxu0 0
        %923 = vmatprep.subr.bf16.mxu0 0
        %924 = vmatpush1.bf16.xpose.msra.mxu0 0
        %925 = vmatprep.subr.bf16.mxu0 0
        %926 = vmatpush1.bf16.xpose.msra.mxu0 0
        %927 = vmatprep.subr.bf16.mxu0 0
        %928 = vmatpush1.bf16.xpose.msra.mxu0 0
        %929 = vmatprep.mubr.bf16.mxu0 0
        %930 = vmatmul.mubr.bf16.gmra.mrb[0].mxu0 %v892
        %v931 = vpop.f32.mrb[0].mxu0
        %v932 = vadd.f32 0.0, %v931
        %v933 = vpop.f32.mrb[0].mxu0
        %v934 = vpop.f32.mrb[0].mxu0
        %v935 = vpop.f32.mrb[0].mxu0
        %936 = vdwg.mxu0
        %v937 = vsel %vm507, %v932, -inf
        %938 = vmax.xlane.f32.xlu0 %v937
        %v939 = vpop.xlane.xlu0 %938
        %v940 = vsub.f32 %v932, %v939
        %v941 = vmul.f32 %v940, 1.442695
        %v942 = vpow.pop %v941
        %v943 = vsel %vm507, %v942, 0.0
        %944 = vadd.xlane.f32.xlu0 %v943
        %v945 = vpop.xlane.xlu0 %944
        %v946 = vrcp.pop %v945
        %v947 = vmul.f32 %v942, %v946
        %v948 = vpack.c.bf16 %v947, %v947
        %v950 = vunpack.c.l.b16 %v880
        %v951 = vpack.c.b16 %v950, %v950
        %952 = vrot.lane.b32.xlu0 %v951, 104
        %v953 = vpop.permute.xlu0 %952
        %v955 = vsel %vm507, %v948, 0
        %v958 = vsel %vm569, %v953, 0
        %960 = vmatprep.subr.bf16.mxu0 0
        %961 = vmatpush1.bf16.msra.mxu0 %v958
        %962 = vmatprep.subr.bf16.mxu0 0
        %963 = vmatpush1.bf16.msra.mxu0 0
        %964 = vmatprep.subr.bf16.mxu0 0
        %965 = vmatpush1.bf16.msra.mxu0 0
        %966 = vmatprep.subr.bf16.mxu0 0
        %967 = vmatpush1.bf16.msra.mxu0 0
        %968 = vmatprep.subr.bf16.mxu0 0
        %969 = vmatpush1.bf16.msra.mxu0 0
        %970 = vmatprep.subr.bf16.mxu0 0
        %971 = vmatpush1.bf16.msra.mxu0 0
        %972 = vmatprep.subr.bf16.mxu0 0
        %973 = vmatpush1.bf16.msra.mxu0 0
        %974 = vmatprep.subr.bf16.mxu0 0
        %975 = vmatpush1.bf16.msra.mxu0 0
        %976 = vmatprep.subr.bf16.mxu0 0
        %977 = vmatpush1.bf16.msra.mxu0 0
        %978 = vmatprep.subr.bf16.mxu0 0
        %979 = vmatpush1.bf16.msra.mxu0 0
        %980 = vmatprep.subr.bf16.mxu0 0
        %981 = vmatpush1.bf16.msra.mxu0 0
        %982 = vmatprep.subr.bf16.mxu0 0
        %983 = vmatpush1.bf16.msra.mxu0 0
        %984 = vmatprep.subr.bf16.mxu0 0
        %985 = vmatpush1.bf16.msra.mxu0 0
        %986 = vmatprep.subr.bf16.mxu0 0
        %987 = vmatpush1.bf16.msra.mxu0 0
        %988 = vmatprep.subr.bf16.mxu0 0
        %989 = vmatpush1.bf16.msra.mxu0 0
        %990 = vmatprep.subr.bf16.mxu0 0
        %991 = vmatpush1.bf16.msra.mxu0 0
        %992 = vmatprep.mubr.bf16.mxu0 0
        %993 = vmatmul.mubr.bf16.gmra.mrb[0].mxu0 %v955
        %v994 = vpop.f32.mrb[0].mxu0
        %v995 = vadd.f32 0.0, %v994
        %v996 = vpop.f32.mrb[0].mxu0
        %v997 = vpop.f32.mrb[0].mxu0
        %v998 = vpop.f32.mrb[0].mxu0
        %999 = vdwg.mxu0
        %v1000 = vpack.c.bf16 %v995, %v995
        %v1002 = vunpack.c.l.b16 %v1000
        %v1003 = vpack.c.b16 %v1002, %v1002
        %1004 = vrot.lane.b32.xlu0 %v1003, 24
        %v1005 = vpop.permute.xlu0 %1004
        %vm1007 = vcmask 257216
        %1008 = vst.msk [vmem:[#allocation5] sm:$0xf] %vm1007, %v1005
        %v1009 = vld [vmem:[#allocation5] sm:$0xf]
        %v1010 = vld [vmem:[#allocation11] sm:$0xf]
        %v1011 = vld [vmem:[#allocation11 + $0x4] sm:$0xf]
        %v1012 = vld [vmem:[#allocation11 + $0x8] sm:$0xf]
        %v1013 = vld [vmem:[#allocation11 + $0xc] sm:$0xf]
        %v1014 = vld [vmem:[%s4] sm:$0x1]
        %v1016 = vlaneseq
        %v1017 = vshrl.u32 %v1016, 7
        %v1018 = vsub.s32 0, %v1017
        %v1019 = vrot.slane %v1014, %v1018
        %v1025 = vunpack.c.l.b16 %v1010
        %v1026 = vunpack.c.l.b16 %v1011
        %v1027 = vunpack.c.l.b16 %v1012
        %v1028 = vunpack.c.l.b16 %v1013
        %v1029 = vpack.c.b16 %v1026, %v1025
        %v1030 = vpack.c.b16 %v1028, %v1027
        %v1034 = vsel %vm457, %v1009, 0
        %1036 = vmatprep.subr.bf16.mxu0 0
        %1037 = vmatpush1.bf16.msra.mxu0 %v1029
        %1038 = vmatprep.subr.bf16.mxu0 0
        %1039 = vmatpush1.bf16.msra.mxu0 %v1030
        %1040 = vmatprep.subr.bf16.mxu0 0
        %1041 = vmatpush1.bf16.msra.mxu0 0
        %1042 = vmatprep.subr.bf16.mxu0 0
        %1043 = vmatpush1.bf16.msra.mxu0 0
        %1044 = vmatprep.subr.bf16.mxu0 0
        %1045 = vmatpush1.bf16.msra.mxu0 0
        %1046 = vmatprep.subr.bf16.mxu0 0
        %1047 = vmatpush1.bf16.msra.mxu0 0
        %1048 = vmatprep.subr.bf16.mxu0 0
        %1049 = vmatpush1.bf16.msra.mxu0 0
        %1050 = vmatprep.subr.bf16.mxu0 0
        %1051 = vmatpush1.bf16.msra.mxu0 0
        %1052 = vmatprep.subr.bf16.mxu0 0
        %1053 = vmatpush1.bf16.msra.mxu0 0
        %1054 = vmatprep.subr.bf16.mxu0 0
        %1055 = vmatpush1.bf16.msra.mxu0 0
        %1056 = vmatprep.subr.bf16.mxu0 0
        %1057 = vmatpush1.bf16.msra.mxu0 0
        %1058 = vmatprep.subr.bf16.mxu0 0
        %1059 = vmatpush1.bf16.msra.mxu0 0
        %1060 = vmatprep.subr.bf16.mxu0 0
        %1061 = vmatpush1.bf16.msra.mxu0 0
        %1062 = vmatprep.subr.bf16.mxu0 0
        %1063 = vmatpush1.bf16.msra.mxu0 0
        %1064 = vmatprep.subr.bf16.mxu0 0
        %1065 = vmatpush1.bf16.msra.mxu0 0
        %1066 = vmatprep.subr.bf16.mxu0 0
        %1067 = vmatpush1.bf16.msra.mxu0 0
        %1068 = vmatprep.mubr.bf16.mxu0 0
        %1069 = vmatmul.mubr.bf16.gmra.mrb[0].mxu0 %v1034
        %v1070 = vpop.f32.mrb[0].mxu0
        %v1071 = vadd.f32 %v1019, %v1070
        %v1072 = vpop.f32.mrb[0].mxu0
        %v1073 = vpop.f32.mrb[0].mxu0
        %v1074 = vpop.f32.mrb[0].mxu0
        %1075 = vdwg.mxu0
        %1076 = vst.msk [vmem:[%s282] sm:$0xff] %vm457, %v1071
        %s1077 = sand.u32 %s155, 1
        %s1078 = scalar_lea.sflag [#allocation8], %s1077
        %s1079 = sand.u32 %s155, 1
        %s1080 = smul.addr %s1079, 8
        %s1081 = scalar_lea.vmem [#allocation12], %s1080
        // Predicated region
        $region57: #{tpu_custom_call.1} parent=39 // pred_check
          %p1082 = pneg %p165
        $region58: #{tpu_custom_call.1} parent=39 // pred_check_branch
          %1084 = sbr.rel (%p1082) target = $region60
        $region59: #{tpu_custom_call.1} parent=39 // pred_region
          %s1086 = ssub.s32 128, 128
          %1087 = vsyncadd %s1078, %s1086
          %s1088 = sadd.s32 %s28, %s27
          %s1089 = smul.addr %s1088, 128
          %s1090 = scalar_lea.hbm %s5, %s1089
          %s1092 = sshll.u32 %s1081, 4
          %s1093 = int_to_ptr.vmem [resolvable:$true] %s1092
          %1095 = dma.vmem_to_hbm [thread:$0]  %s1093, 128, %s1090, %s1078
        $region60: #{tpu_custom_call.1} parent=39 // pred_fallthru
          _
      $region40: #{tpu_custom_call.1} parent=5 // pred_fallthru
        _
      %p1096 = scmp.le.s32.totalorder 2, %s18
      // Predicated region
      $region61: #{tpu_custom_call.1} parent=5 // pred_check
        %p1097 = pneg %p1096
      $region62: #{tpu_custom_call.1} parent=5 // pred_check_branch
        %1099 = sbr.rel (%p1097) target = $region64
      $region63: #{tpu_custom_call.1} parent=5 // pred_region
        %s1100 = ssub.s32 %s18, 2
        // Predicated region
        $region65: #{tpu_custom_call.1} parent=63 // pred_check
          %p1101 = pneg %p171
        $region66: #{tpu_custom_call.1} parent=63 // pred_check_branch
          %1103 = sbr.rel (%p1101) target = $region68
        $region67: #{tpu_custom_call.1} parent=63 // pred_region
          %s1104 = sand.u32 %s156, 1
          %s1105 = scalar_lea.sflag [#allocation8], %s1104
          %s1106 = sand.u32 %s156, 1
          %s1107 = smul.addr %s1106, 8
          %s1108 = scalar_lea.vmem [#allocation12], %s1107
          %1109 = dma.done %s1105, 128
        $region68: #{tpu_custom_call.1} parent=63 // pred_fallthru
          _
      $region64: #{tpu_custom_call.1} parent=5 // pred_fallthru
        _
    $region6: #{tpu_custom_call.1} parent=1 // loop_footer
      %s22 = sadd.s32 1, %s18
    $region7: #{tpu_custom_call.1} parent=1 // loop_footer_branch
      %17 = sbr.rel target = $region3
    $region8: #{tpu_custom_call.1} parent=1 // loop_exit
      _
    %1110 = vsyncpa [#allocation7], 1
    %s1111 = scalar_lea.sflag [#allocation7], 1
    %1112 = vsyncpa %s1111, 1
    %1113 = vsyncpa [#allocation10], 1
    %1114 = vsyncpa [#allocation8], 1
    %s1115 = scalar_lea.sflag [#allocation8], 1
    %1116 = vsyncpa %s1115, 1

</llo_original>
